<compile_context>
chip_gen: v6e
topology: v6e:2x2x1
jax: 0.10.0
libtpu: 0.0.40
codegen_flags: <defaults>
</compile_context>

<pallas_src>
import functools

import jax
import jax.numpy as jnp
from jax.experimental import pallas as pl
from jax.experimental.pallas import tpu as pltpu


# -----------------------------------------------------------------------------
# Pallas kernel: both LSTM directions of one bidirectional layer.
# grid = (2,)  -> one grid point per direction ("parallel" for megacore).
# The whole time recurrence runs inside the kernel with lax.fori_loop.
# -----------------------------------------------------------------------------
def _bidir_lstm_kernel(len_ref, xg_ref, whh_ref,
                       out_ref, hN_ref, cN_ref, *, hidden, seq_len):
    H = hidden
    T = seq_len
    B = len_ref.shape[0]
    d = pl.program_id(0)                       # 0 = forward, 1 = backward

    whh = whh_ref[0]                           # (H, 4H) bf16, resident in VMEM
    # Hoisted out of the time loop (JAX does not CSE broadcast_in_dim).
    lens_bh = jnp.broadcast_to(len_ref[...], (B, H))        # (B, H) int32

    def step(i, carry):
        h, c = carry                                         # (B, H) f32 each
        # forward: t = i ; backward: t = T-1-i  (no HBM flip needed)
        t = jnp.where(d == 0, i, T - 1 - i)

        xg_t = xg_ref[0, t]                                  # (B, 4H) f32
        gates = xg_t + jnp.dot(h.astype(jnp.bfloat16), whh,
                               preferred_element_type=jnp.float32)

        ig = jax.nn.sigmoid(gates[:, 0 * H:1 * H])
        fg = jax.nn.sigmoid(gates[:, 1 * H:2 * H])
        gg = jnp.tanh(gates[:, 2 * H:3 * H])
        og = jax.nn.sigmoid(gates[:, 3 * H:4 * H])

        c_raw = fg * c + ig * gg
        h_raw = og * jnp.tanh(c_raw)

        # pack_padded_sequence semantics: freeze state / zero output past length.
        m = (t < lens_bh).astype(jnp.float32)                # (B, H)
        out_ref[0, t] = m * h_raw
        h_new = m * h_raw + (1.0 - m) * h
        c_new = m * c_raw + (1.0 - m) * c
        return h_new, c_new

    h0 = jnp.zeros((B, H), jnp.float32)
    c0 = jnp.zeros((B, H), jnp.float32)
    hT, cT = jax.lax.fori_loop(0, T, step, (h0, c0))

    # Final states written once per direction (not every step).
    hN_ref[0] = hT
    cN_ref[0] = cT


def bidir_lstm(x, lengths, params):
    """Bidirectional 1-layer LSTM with length masking.

    x: (T, B, E) f32; lengths: (B,) int32.
    Returns out (T, B, 2H), (h_n, c_n) each (2, B, H) in [fwd, bwd] order.
    """
    T, B, E = x.shape
    wih_f, whh_f, b_f = params["fwd"]          # (E,4H), (H,4H), (1,4H)
    wih_b, whh_b, b_b = params["bwd"]
    H = whh_f.shape[0]

    # ---- hoisted input projection: one big MXU-friendly matmul (both dirs) ----
    x2 = x.reshape(T * B, E).astype(jnp.bfloat16)
    wih_both = jnp.concatenate([wih_f, wih_b], axis=1).astype(jnp.bfloat16)  # (E, 8H)
    b_both = jnp.concatenate([b_f, b_b], axis=1)                             # (1, 8H)
    xg = jnp.dot(x2, wih_both, preferred_element_type=jnp.float32) + b_both  # (T*B, 8H)
    xg = xg.reshape(T, B, 2, 4 * H).transpose(2, 0, 1, 3)                    # (2, T, B, 4H)

    whh = jnp.stack([whh_f, whh_b], axis=0).astype(jnp.bfloat16)             # (2, H, 4H)
    lens2 = lengths.reshape(B, 1).astype(jnp.int32)

    out, hN, cN = pl.pallas_call(
        functools.partial(_bidir_lstm_kernel, hidden=H, seq_len=T),
        out_shape=(
            jax.ShapeDtypeStruct((2, T, B, H), jnp.float32),
            jax.ShapeDtypeStruct((2, B, H), jnp.float32),
            jax.ShapeDtypeStruct((2, B, H), jnp.float32),
        ),
        grid=(2,),
        in_specs=[
            pl.BlockSpec((B, 1), lambda d: (0, 0)),                  # lengths
            pl.BlockSpec((1, T, B, 4 * H), lambda d: (d, 0, 0, 0)),  # precomputed gates
            pl.BlockSpec((1, H, 4 * H), lambda d: (d, 0, 0)),        # recurrent weights
        ],
        out_specs=(
            pl.BlockSpec((1, T, B, H), lambda d: (d, 0, 0, 0)),
            pl.BlockSpec((1, B, H), lambda d: (d, 0, 0)),
            pl.BlockSpec((1, B, H), lambda d: (d, 0, 0)),
        ),
        compiler_params=pltpu.CompilerParams(
            dimension_semantics=("parallel",)),
    )(lens2, xg, whh)

    out_cat = jnp.concatenate([out[0], out[1]], axis=-1)     # (T, B, 2H)
    return out_cat, (hN, cN)                                  # states: (2, B, H)


# -----------------------------------------------------------------------------
# Parameter construction (deterministic, PyTorch-LSTM-like init).
# -----------------------------------------------------------------------------
def _init_lstm_params(key, emb_size, hidden_dir):
    scale = 1.0 / jnp.sqrt(hidden_dir)
    ks = jax.random.split(key, 8)

    def u(k, shape):
        return jax.random.uniform(k, shape, jnp.float32, -scale, scale)

    def one_dir(k4):
        w_ih = u(k4[0], (4 * hidden_dir, emb_size))
        w_hh = u(k4[1], (4 * hidden_dir, hidden_dir))
        b_ih = u(k4[2], (4 * hidden_dir,))
        b_hh = u(k4[3], (4 * hidden_dir,))
        # pre-transpose + fuse biases for the kernel / hoisted matmul
        return (w_ih.T, w_hh.T, (b_ih + b_hh)[None, :])

    return {"fwd": one_dir(ks[:4]), "bwd": one_dir(ks[4:])}


def init_params(key, vocab, emb_size, hidden_size):
    assert hidden_size % 2 == 0
    h_dir = hidden_size // 2
    k_emb, k_word, k_sent, k_init = jax.random.split(key, 4)
    return {
        "embedding": jax.random.normal(k_emb, (vocab, emb_size), jnp.float32) * 0.1,
        "word_enc": _init_lstm_params(k_word, emb_size, h_dir),
        "sent_enc": _init_lstm_params(k_sent, hidden_size, h_dir),
        "init_enc": _init_lstm_params(k_init, emb_size, h_dir),
    }


# -----------------------------------------------------------------------------
# DistractorEncoder.forward
# -----------------------------------------------------------------------------
def distractor_encoder_forward(params, src, ques, ans, adj,
                               sent_length, word_length, ques_length, ans_length):
    del adj, ans, ans_length  # adj unused; ans path does not affect the return
    emb = params["embedding"]
    bs, max_sent, max_word = src.shape

    # ---- word-level encoder over all (batch, sentence) pairs -----------------
    # PermutationWrapper2D + pack/remap == masked LSTM with per-sentence length,
    # with padded sentences (idx >= sent_length) mapped to all-zero rows.
    src_flat = jnp.transpose(src.reshape(bs * max_sent, max_word))    # (Tw, bs*S)
    valid_sent = jnp.arange(max_sent)[None, :] < sent_length[:, None]
    wlen_flat = jnp.where(valid_sent, word_length, 0).reshape(-1)
    src_emb = jnp.take(emb, src_flat, axis=0)                         # (Tw, bs*S, E)
    word_out, (word_h, _word_c) = bidir_lstm(src_emb, wlen_flat, params["word_enc"])
    hid2 = word_out.shape[-1]
    word_bank = word_out.reshape(max_word, bs, max_sent, hid2)

    # NOTE: the reference forward also runs ques/ans through word_encoder, but
    # those results are never used in the returned tuple -> skipped here.

    # ---- sentence-level encoder ----------------------------------------------
    # sent_emb = word_state[0].transpose(0,2)[:, :, -2:, :].view(S, bs, hidden)
    h_dir = word_h.shape[-1]
    word_h4 = word_h.reshape(2, bs, max_sent, h_dir)
    sent_emb = jnp.transpose(word_h4, (2, 1, 0, 3)).reshape(max_sent, bs, 2 * h_dir)
    sent_bank, _sent_state = bidir_lstm(sent_emb, sent_length, params["sent_enc"])

    # ---- question-init encoder ------------------------------------------------
    quesinit_emb = jnp.take(emb, ques, axis=0)                        # (Tq, bs, E)
    _quesinit_bank, quesinit_state = bidir_lstm(quesinit_emb, ques_length,
                                                params["init_enc"])

    return word_bank, sent_bank, quesinit_state, None


# -----------------------------------------------------------------------------
if __name__ == "__main__":
    key = jax.random.PRNGKey(0)

    # small shapes
    vocab = 50
    emb_size = 32
    hidden_size = 32
    bs, max_sent, max_word = 2, 3, 8
    ques_len, ans_len = 6, 4

    k_p, k_src, k_q, k_a = jax.random.split(key, 4)
    params = init_params(k_p, vocab, emb_size, hidden_size)

    src = jax.random.randint(k_src, (bs, max_sent, max_word), 1, vocab, jnp.int32)
    ques = jax.random.randint(k_q, (ques_len, bs), 1, vocab, jnp.int32)   # time-major
    ans = jax.random.randint(k_a, (ans_len, bs), 1, vocab, jnp.int32)     # time-major
    adj = None

    sent_length = jnp.array([3, 2], dtype=jnp.int32)
    word_length = jnp.array([[8, 5, 3], [6, 4, 0]], dtype=jnp.int32)
    ques_length = jnp.array([6, 5], dtype=jnp.int32)
    ans_length = jnp.array([4, 3], dtype=jnp.int32)

    fwd = jax.jit(distractor_encoder_forward)
    word_bank, sent_bank, quesinit_state, _none = fwd(
        params, src, ques, ans, adj, sent_length, word_length, ques_length, ans_length)

    jax.block_until_ready(word_bank)
    jax.block_until_ready(sent_bank)
    jax.block_until_ready(quesinit_state[0])
    jax.block_until_ready(quesinit_state[1])

    assert word_bank.shape == (max_word, bs, max_sent, hidden_size)
    assert sent_bank.shape == (max_sent, bs, hidden_size)
    assert quesinit_state[0].shape == (2, bs, hidden_size // 2)
    assert quesinit_state[1].shape == (2, bs, hidden_size // 2)

    print("KERNEL_OK")
</pallas_src>

<mosaic_0001>
module attributes {stable_mosaic.version = 11 : i64} {
  func.func @_bidir_lstm_kernel(%arg0: i32, %arg1: memref<6x1xi32, #tpu.memory_space<vmem>>, %arg2: memref<1x8x6x64xf32, #tpu.memory_space<vmem>>, %arg3: memref<1x16x64xbf16, #tpu.memory_space<vmem>>, %arg4: memref<1x8x6x16xf32, #tpu.memory_space<vmem>>, %arg5: memref<1x6x16xf32, #tpu.memory_space<vmem>>, %arg6: memref<1x6x16xf32, #tpu.memory_space<vmem>>) attributes {dimension_semantics = [#tpu.dimension_semantics<parallel>], iteration_bounds = array<i64: 2>, scalar_prefetch = 0 : i64, scratch_operands = 0 : i64, tpu.core_type = #tpu.core_type<tc>, window_params = [{pipeline_mode = #tpu.pipeline_mode<synchronous>, transform_indices = @transform_0, window_bounds = array<i64: 6, 1>}, {transform_indices = @transform_1, window_bounds = array<i64: 1, 8, 6, 64>}, {transform_indices = @transform_2, window_bounds = array<i64: 1, 16, 64>}, {transform_indices = @transform_3, window_bounds = array<i64: 1, 8, 6, 16>}, {transform_indices = @transform_4, window_bounds = array<i64: 1, 6, 16>}, {transform_indices = @transform_5, window_bounds = array<i64: 1, 6, 16>}]} {
    %c0 = arith.constant 0 : index
    %c0_0 = arith.constant 0 : index
    %c0_1 = arith.constant 0 : index
    %0 = vector.load %arg3[%c0, %c0_0, %c0_1] : memref<1x16x64xbf16, #tpu.memory_space<vmem>>, vector<1x16x64xbf16>
    %1 = vector.shape_cast %0 : vector<1x16x64xbf16> to vector<16x64xbf16>
    %c0_2 = arith.constant 0 : index
    %c0_3 = arith.constant 0 : index
    %2 = vector.load %arg1[%c0_2, %c0_3] : memref<6x1xi32, #tpu.memory_space<vmem>>, vector<6x1xi32>
    %3 = vector.shape_cast %2 : vector<6x1xi32> to vector<6x1xi32>
    %4 = vector.broadcast %3 : vector<6x1xi32> to vector<6x16xi32>
    %cst = arith.constant 0.000000e+00 : f32
    %5 = vector.broadcast %cst : f32 to vector<6x16xf32>
    %cst_4 = arith.constant 0.000000e+00 : f32
    %6 = vector.broadcast %cst_4 : f32 to vector<6x16xf32>
    %c0_i32 = arith.constant 0 : i32
    %c8_i32 = arith.constant 8 : i32
    %7 = arith.addi %c0_i32, %c8_i32 : i32
    %c1_i32 = arith.constant 1 : i32
    %8:2 = scf.for %arg7 = %c0_i32 to %7 step %c1_i32 iter_args(%arg8 = %5, %arg9 = %6) -> (vector<6x16xf32>, vector<6x16xf32>)  : i32 {
      %c0_i32_12 = arith.constant 0 : i32
      %15 = arith.cmpi eq, %arg0, %c0_i32_12 : i32
      %c7_i32 = arith.constant 7 : i32
      %16 = arith.subi %c7_i32, %arg7 : i32
      %17 = arith.select %15, %arg7, %16 : i32
      %c0_13 = arith.constant 0 : index
      %18 = arith.index_cast %17 : i32 to index
      %c0_14 = arith.constant 0 : index
      %c0_15 = arith.constant 0 : index
      %19 = vector.load %arg2[%c0_13, %18, %c0_14, %c0_15] : memref<1x8x6x64xf32, #tpu.memory_space<vmem>>, vector<1x1x6x64xf32>
      %20 = vector.shape_cast %19 : vector<1x1x6x64xf32> to vector<6x64xf32>
      %21 = arith.truncf %arg8 : vector<6x16xf32> to vector<6x16xbf16>
      %cst_16 = arith.constant dense<0.000000e+00> : vector<6x64xf32>
      %22 = tpu.matmul %21, %1, %cst_16 {dimension_numbers = #tpu.dot_dimension_numbers<[1], [0], [0], [1], [0, 0, 1, 1], [], []>} : vector<6x16xbf16>, vector<16x64xbf16>, vector<6x64xf32> -> vector<6x64xf32>
      %23 = arith.addf %20, %22 : vector<6x64xf32>
      %24 = vector.extract_strided_slice %23 {offsets = [0, 0], sizes = [6, 16], strides = [1, 1]} : vector<6x64xf32> to vector<6x16xf32>
      %25 = arith.negf %24 : vector<6x16xf32>
      %26 = math.exp %25 : vector<6x16xf32>
      %cst_17 = arith.constant 1.000000e+00 : f32
      %27 = vector.broadcast %cst_17 : f32 to vector<6x16xf32>
      %28 = arith.addf %27, %26 : vector<6x16xf32>
      %29 = arith.divf %27, %28 : vector<6x16xf32>
      %30 = vector.extract_strided_slice %23 {offsets = [0, 16], sizes = [6, 16], strides = [1, 1]} : vector<6x64xf32> to vector<6x16xf32>
      %31 = arith.negf %30 : vector<6x16xf32>
      %32 = math.exp %31 : vector<6x16xf32>
      %cst_18 = arith.constant 1.000000e+00 : f32
      %33 = vector.broadcast %cst_18 : f32 to vector<6x16xf32>
      %34 = arith.addf %33, %32 : vector<6x16xf32>
      %35 = arith.divf %33, %34 : vector<6x16xf32>
      %36 = vector.extract_strided_slice %23 {offsets = [0, 32], sizes = [6, 16], strides = [1, 1]} : vector<6x64xf32> to vector<6x16xf32>
      %37 = math.tanh %36 : vector<6x16xf32>
      %38 = vector.extract_strided_slice %23 {offsets = [0, 48], sizes = [6, 16], strides = [1, 1]} : vector<6x64xf32> to vector<6x16xf32>
      %39 = arith.negf %38 : vector<6x16xf32>
      %40 = math.exp %39 : vector<6x16xf32>
      %cst_19 = arith.constant 1.000000e+00 : f32
      %41 = vector.broadcast %cst_19 : f32 to vector<6x16xf32>
      %42 = arith.addf %41, %40 : vector<6x16xf32>
      %43 = arith.divf %41, %42 : vector<6x16xf32>
      %44 = arith.mulf %35, %arg9 : vector<6x16xf32>
      %45 = arith.mulf %29, %37 : vector<6x16xf32>
      %46 = arith.addf %44, %45 : vector<6x16xf32>
      %47 = math.tanh %46 : vector<6x16xf32>
      %48 = arith.mulf %43, %47 : vector<6x16xf32>
      %49 = vector.broadcast %17 : i32 to vector<6x16xi32>
      %50 = arith.cmpi slt, %49, %4 : vector<6x16xi32>
      %51 = arith.extui %50 : vector<6x16xi1> to vector<6x16xi32>
      %52 = arith.sitofp %51 : vector<6x16xi32> to vector<6x16xf32>
      %53 = arith.mulf %52, %48 : vector<6x16xf32>
      %c0_20 = arith.constant 0 : index
      %54 = arith.index_cast %17 : i32 to index
      %c0_21 = arith.constant 0 : index
      %c0_22 = arith.constant 0 : index
      %55 = vector.load %arg4[%c0_20, %54, %c0_21, %c0_22] : memref<1x8x6x16xf32, #tpu.memory_space<vmem>>, vector<1x1x6x16xf32>
      %56 = vector.shape_cast %55 : vector<1x1x6x16xf32> to vector<6x16xf32>
      %57 = vector.shape_cast %53 : vector<6x16xf32> to vector<1x1x6x16xf32>
      tpu.vector_store %arg4[%c0_20, %54, %c0_21, %c0_22], %57 {strides = array<i32>} : memref<1x8x6x16xf32, #tpu.memory_space<vmem>>, vector<1x1x6x16xf32>,
      %58 = arith.mulf %52, %48 : vector<6x16xf32>
      %cst_23 = arith.constant 1.000000e+00 : f32
      %59 = vector.broadcast %cst_23 : f32 to vector<6x16xf32>
      %60 = arith.subf %59, %52 : vector<6x16xf32>
      %61 = arith.mulf %60, %arg8 : vector<6x16xf32>
      %62 = arith.addf %58, %61 : vector<6x16xf32>
      %63 = arith.mulf %52, %46 : vector<6x16xf32>
      %cst_24 = arith.constant 1.000000e+00 : f32
      %64 = vector.broadcast %cst_24 : f32 to vector<6x16xf32>
      %65 = arith.subf %64, %52 : vector<6x16xf32>
      %66 = arith.mulf %65, %arg9 : vector<6x16xf32>
      %67 = arith.addf %63, %66 : vector<6x16xf32>
      scf.yield %62, %67 : vector<6x16xf32>, vector<6x16xf32>
    }
    %c8_i32_5 = arith.constant 8 : i32
    %c0_6 = arith.constant 0 : index
    %c0_7 = arith.constant 0 : index
    %c0_8 = arith.constant 0 : index
    %9 = vector.load %arg5[%c0_6, %c0_7, %c0_8] : memref<1x6x16xf32, #tpu.memory_space<vmem>>, vector<1x6x16xf32>
    %10 = vector.shape_cast %9 : vector<1x6x16xf32> to vector<6x16xf32>
    %11 = vector.shape_cast %8#0 : vector<6x16xf32> to vector<1x6x16xf32>
    tpu.vector_store %arg5[%c0_6, %c0_7, %c0_8], %11 {strides = array<i32>} : memref<1x6x16xf32, #tpu.memory_space<vmem>>, vector<1x6x16xf32>,
    %c0_9 = arith.constant 0 : index
    %c0_10 = arith.constant 0 : index
    %c0_11 = arith.constant 0 : index
    %12 = vector.load %arg6[%c0_9, %c0_10, %c0_11] : memref<1x6x16xf32, #tpu.memory_space<vmem>>, vector<1x6x16xf32>
    %13 = vector.shape_cast %12 : vector<1x6x16xf32> to vector<6x16xf32>
    %14 = vector.shape_cast %8#1 : vector<6x16xf32> to vector<1x6x16xf32>
    tpu.vector_store %arg6[%c0_9, %c0_10, %c0_11], %14 {strides = array<i32>} : memref<1x6x16xf32, #tpu.memory_space<vmem>>, vector<1x6x16xf32>,
    return
  }
  func.func @transform_0(%arg0: i32) -> (i32, i32) {
    %c0_i32 = arith.constant 0 : i32
    %c0_i32_0 = arith.constant 0 : i32
    %c0_i32_1 = arith.constant 0 : i32
    return %c0_i32, %c0_i32_0 : i32, i32
  }
  func.func @transform_1(%arg0: i32) -> (i32, i32, i32, i32) {
    %c0_i32 = arith.constant 0 : i32
    %c0_i32_0 = arith.constant 0 : i32
    %c0_i32_1 = arith.constant 0 : i32
    %c0_i32_2 = arith.constant 0 : i32
    return %arg0, %c0_i32, %c0_i32_0, %c0_i32_1 : i32, i32, i32, i32
  }
  func.func @transform_2(%arg0: i32) -> (i32, i32, i32) {
    %c0_i32 = arith.constant 0 : i32
    %c0_i32_0 = arith.constant 0 : i32
    %c0_i32_1 = arith.constant 0 : i32
    return %arg0, %c0_i32, %c0_i32_0 : i32, i32, i32
  }
  func.func @transform_3(%arg0: i32) -> (i32, i32, i32, i32) {
    %c0_i32 = arith.constant 0 : i32
    %c0_i32_0 = arith.constant 0 : i32
    %c0_i32_1 = arith.constant 0 : i32
    %c0_i32_2 = arith.constant 0 : i32
    return %arg0, %c0_i32, %c0_i32_0, %c0_i32_1 : i32, i32, i32, i32
  }
  func.func @transform_4(%arg0: i32) -> (i32, i32, i32) {
    %c0_i32 = arith.constant 0 : i32
    %c0_i32_0 = arith.constant 0 : i32
    %c0_i32_1 = arith.constant 0 : i32
    return %arg0, %c0_i32, %c0_i32_0 : i32, i32, i32
  }
  func.func @transform_5(%arg0: i32) -> (i32, i32, i32) {
    %c0_i32 = arith.constant 0 : i32
    %c0_i32_0 = arith.constant 0 : i32
    %c0_i32_1 = arith.constant 0 : i32
    return %arg0, %c0_i32, %c0_i32_0 : i32, i32, i32
  }
}

module attributes {stable_mosaic.version = 11 : i64} {
  func.func @_bidir_lstm_kernel(%arg0: i32, %arg1: memref<2x1xi32, #tpu.memory_space<vmem>>, %arg2: memref<1x3x2x64xf32, #tpu.memory_space<vmem>>, %arg3: memref<1x16x64xbf16, #tpu.memory_space<vmem>>, %arg4: memref<1x3x2x16xf32, #tpu.memory_space<vmem>>, %arg5: memref<1x2x16xf32, #tpu.memory_space<vmem>>, %arg6: memref<1x2x16xf32, #tpu.memory_space<vmem>>) attributes {dimension_semantics = [#tpu.dimension_semantics<parallel>], iteration_bounds = array<i64: 2>, scalar_prefetch = 0 : i64, scratch_operands = 0 : i64, tpu.core_type = #tpu.core_type<tc>, window_params = [{pipeline_mode = #tpu.pipeline_mode<synchronous>, transform_indices = @transform_0, window_bounds = array<i64: 2, 1>}, {transform_indices = @transform_1, window_bounds = array<i64: 1, 3, 2, 64>}, {transform_indices = @transform_2, window_bounds = array<i64: 1, 16, 64>}, {transform_indices = @transform_3, window_bounds = array<i64: 1, 3, 2, 16>}, {transform_indices = @transform_4, window_bounds = array<i64: 1, 2, 16>}, {transform_indices = @transform_5, window_bounds = array<i64: 1, 2, 16>}]} {
    %c0 = arith.constant 0 : index
    %c0_0 = arith.constant 0 : index
    %c0_1 = arith.constant 0 : index
    %0 = vector.load %arg3[%c0, %c0_0, %c0_1] : memref<1x16x64xbf16, #tpu.memory_space<vmem>>, vector<1x16x64xbf16>
    %1 = vector.shape_cast %0 : vector<1x16x64xbf16> to vector<16x64xbf16>
    %c0_2 = arith.constant 0 : index
    %c0_3 = arith.constant 0 : index
    %2 = vector.load %arg1[%c0_2, %c0_3] : memref<2x1xi32, #tpu.memory_space<vmem>>, vector<2x1xi32>
    %3 = vector.shape_cast %2 : vector<2x1xi32> to vector<2x1xi32>
    %4 = vector.broadcast %3 : vector<2x1xi32> to vector<2x16xi32>
    %cst = arith.constant 0.000000e+00 : f32
    %5 = vector.broadcast %cst : f32 to vector<2x16xf32>
    %cst_4 = arith.constant 0.000000e+00 : f32
    %6 = vector.broadcast %cst_4 : f32 to vector<2x16xf32>
    %c0_i32 = arith.constant 0 : i32
    %c3_i32 = arith.constant 3 : i32
    %7 = arith.addi %c0_i32, %c3_i32 : i32
    %c1_i32 = arith.constant 1 : i32
    %8:2 = scf.for %arg7 = %c0_i32 to %7 step %c1_i32 iter_args(%arg8 = %5, %arg9 = %6) -> (vector<2x16xf32>, vector<2x16xf32>)  : i32 {
      %c0_i32_12 = arith.constant 0 : i32
      %15 = arith.cmpi eq, %arg0, %c0_i32_12 : i32
      %c2_i32 = arith.constant 2 : i32
      %16 = arith.subi %c2_i32, %arg7 : i32
      %17 = arith.select %15, %arg7, %16 : i32
      %c0_13 = arith.constant 0 : index
      %18 = arith.index_cast %17 : i32 to index
      %c0_14 = arith.constant 0 : index
      %c0_15 = arith.constant 0 : index
      %19 = vector.load %arg2[%c0_13, %18, %c0_14, %c0_15] : memref<1x3x2x64xf32, #tpu.memory_space<vmem>>, vector<1x1x2x64xf32>
      %20 = vector.shape_cast %19 : vector<1x1x2x64xf32> to vector<2x64xf32>
      %21 = arith.truncf %arg8 : vector<2x16xf32> to vector<2x16xbf16>
      %cst_16 = arith.constant dense<0.000000e+00> : vector<2x64xf32>
      %22 = tpu.matmul %21, %1, %cst_16 {dimension_numbers = #tpu.dot_dimension_numbers<[1], [0], [0], [1], [0, 0, 1, 1], [], []>} : vector<2x16xbf16>, vector<16x64xbf16>, vector<2x64xf32> -> vector<2x64xf32>
      %23 = arith.addf %20, %22 : vector<2x64xf32>
      %24 = vector.extract_strided_slice %23 {offsets = [0, 0], sizes = [2, 16], strides = [1, 1]} : vector<2x64xf32> to vector<2x16xf32>
      %25 = arith.negf %24 : vector<2x16xf32>
      %26 = math.exp %25 : vector<2x16xf32>
      %cst_17 = arith.constant 1.000000e+00 : f32
      %27 = vector.broadcast %cst_17 : f32 to vector<2x16xf32>
      %28 = arith.addf %27, %26 : vector<2x16xf32>
      %29 = arith.divf %27, %28 : vector<2x16xf32>
      %30 = vector.extract_strided_slice %23 {offsets = [0, 16], sizes = [2, 16], strides = [1, 1]} : vector<2x64xf32> to vector<2x16xf32>
      %31 = arith.negf %30 : vector<2x16xf32>
      %32 = math.exp %31 : vector<2x16xf32>
      %cst_18 = arith.constant 1.000000e+00 : f32
      %33 = vector.broadcast %cst_18 : f32 to vector<2x16xf32>
      %34 = arith.addf %33, %32 : vector<2x16xf32>
      %35 = arith.divf %33, %34 : vector<2x16xf32>
      %36 = vector.extract_strided_slice %23 {offsets = [0, 32], sizes = [2, 16], strides = [1, 1]} : vector<2x64xf32> to vector<2x16xf32>
      %37 = math.tanh %36 : vector<2x16xf32>
      %38 = vector.extract_strided_slice %23 {offsets = [0, 48], sizes = [2, 16], strides = [1, 1]} : vector<2x64xf32> to vector<2x16xf32>
      %39 = arith.negf %38 : vector<2x16xf32>
      %40 = math.exp %39 : vector<2x16xf32>
      %cst_19 = arith.constant 1.000000e+00 : f32
      %41 = vector.broadcast %cst_19 : f32 to vector<2x16xf32>
      %42 = arith.addf %41, %40 : vector<2x16xf32>
      %43 = arith.divf %41, %42 : vector<2x16xf32>
      %44 = arith.mulf %35, %arg9 : vector<2x16xf32>
      %45 = arith.mulf %29, %37 : vector<2x16xf32>
      %46 = arith.addf %44, %45 : vector<2x16xf32>
      %47 = math.tanh %46 : vector<2x16xf32>
      %48 = arith.mulf %43, %47 : vector<2x16xf32>
      %49 = vector.broadcast %17 : i32 to vector<2x16xi32>
      %50 = arith.cmpi slt, %49, %4 : vector<2x16xi32>
      %51 = arith.extui %50 : vector<2x16xi1> to vector<2x16xi32>
      %52 = arith.sitofp %51 : vector<2x16xi32> to vector<2x16xf32>
      %53 = arith.mulf %52, %48 : vector<2x16xf32>
      %c0_20 = arith.constant 0 : index
      %54 = arith.index_cast %17 : i32 to index
      %c0_21 = arith.constant 0 : index
      %c0_22 = arith.constant 0 : index
      %55 = vector.load %arg4[%c0_20, %54, %c0_21, %c0_22] : memref<1x3x2x16xf32, #tpu.memory_space<vmem>>, vector<1x1x2x16xf32>
      %56 = vector.shape_cast %55 : vector<1x1x2x16xf32> to vector<2x16xf32>
      %57 = vector.shape_cast %53 : vector<2x16xf32> to vector<1x1x2x16xf32>
      tpu.vector_store %arg4[%c0_20, %54, %c0_21, %c0_22], %57 {strides = array<i32>} : memref<1x3x2x16xf32, #tpu.memory_space<vmem>>, vector<1x1x2x16xf32>,
      %58 = arith.mulf %52, %48 : vector<2x16xf32>
      %cst_23 = arith.constant 1.000000e+00 : f32
      %59 = vector.broadcast %cst_23 : f32 to vector<2x16xf32>
      %60 = arith.subf %59, %52 : vector<2x16xf32>
      %61 = arith.mulf %60, %arg8 : vector<2x16xf32>
      %62 = arith.addf %58, %61 : vector<2x16xf32>
      %63 = arith.mulf %52, %46 : vector<2x16xf32>
      %cst_24 = arith.constant 1.000000e+00 : f32
      %64 = vector.broadcast %cst_24 : f32 to vector<2x16xf32>
      %65 = arith.subf %64, %52 : vector<2x16xf32>
      %66 = arith.mulf %65, %arg9 : vector<2x16xf32>
      %67 = arith.addf %63, %66 : vector<2x16xf32>
      scf.yield %62, %67 : vector<2x16xf32>, vector<2x16xf32>
    }
    %c3_i32_5 = arith.constant 3 : i32
    %c0_6 = arith.constant 0 : index
    %c0_7 = arith.constant 0 : index
    %c0_8 = arith.constant 0 : index
    %9 = vector.load %arg5[%c0_6, %c0_7, %c0_8] : memref<1x2x16xf32, #tpu.memory_space<vmem>>, vector<1x2x16xf32>
    %10 = vector.shape_cast %9 : vector<1x2x16xf32> to vector<2x16xf32>
    %11 = vector.shape_cast %8#0 : vector<2x16xf32> to vector<1x2x16xf32>
    tpu.vector_store %arg5[%c0_6, %c0_7, %c0_8], %11 {strides = array<i32>} : memref<1x2x16xf32, #tpu.memory_space<vmem>>, vector<1x2x16xf32>,
    %c0_9 = arith.constant 0 : index
    %c0_10 = arith.constant 0 : index
    %c0_11 = arith.constant 0 : index
    %12 = vector.load %arg6[%c0_9, %c0_10, %c0_11] : memref<1x2x16xf32, #tpu.memory_space<vmem>>, vector<1x2x16xf32>
    %13 = vector.shape_cast %12 : vector<1x2x16xf32> to vector<2x16xf32>
    %14 = vector.shape_cast %8#1 : vector<2x16xf32> to vector<1x2x16xf32>
    tpu.vector_store %arg6[%c0_9, %c0_10, %c0_11], %14 {strides = array<i32>} : memref<1x2x16xf32, #tpu.memory_space<vmem>>, vector<1x2x16xf32>,
    return
  }
  func.func @transform_0(%arg0: i32) -> (i32, i32) {
    %c0_i32 = arith.constant 0 : i32
    %c0_i32_0 = arith.constant 0 : i32
    %c0_i32_1 = arith.constant 0 : i32
    return %c0_i32, %c0_i32_0 : i32, i32
  }
  func.func @transform_1(%arg0: i32) -> (i32, i32, i32, i32) {
    %c0_i32 = arith.constant 0 : i32
    %c0_i32_0 = arith.constant 0 : i32
    %c0_i32_1 = arith.constant 0 : i32
    %c0_i32_2 = arith.constant 0 : i32
    return %arg0, %c0_i32, %c0_i32_0, %c0_i32_1 : i32, i32, i32, i32
  }
  func.func @transform_2(%arg0: i32) -> (i32, i32, i32) {
    %c0_i32 = arith.constant 0 : i32
    %c0_i32_0 = arith.constant 0 : i32
    %c0_i32_1 = arith.constant 0 : i32
    return %arg0, %c0_i32, %c0_i32_0 : i32, i32, i32
  }
  func.func @transform_3(%arg0: i32) -> (i32, i32, i32, i32) {
    %c0_i32 = arith.constant 0 : i32
    %c0_i32_0 = arith.constant 0 : i32
    %c0_i32_1 = arith.constant 0 : i32
    %c0_i32_2 = arith.constant 0 : i32
    return %arg0, %c0_i32, %c0_i32_0, %c0_i32_1 : i32, i32, i32, i32
  }
  func.func @transform_4(%arg0: i32) -> (i32, i32, i32) {
    %c0_i32 = arith.constant 0 : i32
    %c0_i32_0 = arith.constant 0 : i32
    %c0_i32_1 = arith.constant 0 : i32
    return %arg0, %c0_i32, %c0_i32_0 : i32, i32, i32
  }
  func.func @transform_5(%arg0: i32) -> (i32, i32, i32) {
    %c0_i32 = arith.constant 0 : i32
    %c0_i32_0 = arith.constant 0 : i32
    %c0_i32_1 = arith.constant 0 : i32
    return %arg0, %c0_i32, %c0_i32_0 : i32, i32, i32
  }
}

module attributes {stable_mosaic.version = 11 : i64} {
  func.func @_bidir_lstm_kernel(%arg0: i32, %arg1: memref<2x1xi32, #tpu.memory_space<vmem>>, %arg2: memref<1x6x2x64xf32, #tpu.memory_space<vmem>>, %arg3: memref<1x16x64xbf16, #tpu.memory_space<vmem>>, %arg4: memref<1x6x2x16xf32, #tpu.memory_space<vmem>>, %arg5: memref<1x2x16xf32, #tpu.memory_space<vmem>>, %arg6: memref<1x2x16xf32, #tpu.memory_space<vmem>>) attributes {dimension_semantics = [#tpu.dimension_semantics<parallel>], iteration_bounds = array<i64: 2>, scalar_prefetch = 0 : i64, scratch_operands = 0 : i64, tpu.core_type = #tpu.core_type<tc>, window_params = [{pipeline_mode = #tpu.pipeline_mode<synchronous>, transform_indices = @transform_0, window_bounds = array<i64: 2, 1>}, {transform_indices = @transform_1, window_bounds = array<i64: 1, 6, 2, 64>}, {transform_indices = @transform_2, window_bounds = array<i64: 1, 16, 64>}, {transform_indices = @transform_3, window_bounds = array<i64: 1, 6, 2, 16>}, {transform_indices = @transform_4, window_bounds = array<i64: 1, 2, 16>}, {transform_indices = @transform_5, window_bounds = array<i64: 1, 2, 16>}]} {
    %c0 = arith.constant 0 : index
    %c0_0 = arith.constant 0 : index
    %c0_1 = arith.constant 0 : index
    %0 = vector.load %arg3[%c0, %c0_0, %c0_1] : memref<1x16x64xbf16, #tpu.memory_space<vmem>>, vector<1x16x64xbf16>
    %1 = vector.shape_cast %0 : vector<1x16x64xbf16> to vector<16x64xbf16>
    %c0_2 = arith.constant 0 : index
    %c0_3 = arith.constant 0 : index
    %2 = vector.load %arg1[%c0_2, %c0_3] : memref<2x1xi32, #tpu.memory_space<vmem>>, vector<2x1xi32>
    %3 = vector.shape_cast %2 : vector<2x1xi32> to vector<2x1xi32>
    %4 = vector.broadcast %3 : vector<2x1xi32> to vector<2x16xi32>
    %cst = arith.constant 0.000000e+00 : f32
    %5 = vector.broadcast %cst : f32 to vector<2x16xf32>
    %cst_4 = arith.constant 0.000000e+00 : f32
    %6 = vector.broadcast %cst_4 : f32 to vector<2x16xf32>
    %c0_i32 = arith.constant 0 : i32
    %c6_i32 = arith.constant 6 : i32
    %7 = arith.addi %c0_i32, %c6_i32 : i32
    %c1_i32 = arith.constant 1 : i32
    %8:2 = scf.for %arg7 = %c0_i32 to %7 step %c1_i32 iter_args(%arg8 = %5, %arg9 = %6) -> (vector<2x16xf32>, vector<2x16xf32>)  : i32 {
      %c0_i32_12 = arith.constant 0 : i32
      %15 = arith.cmpi eq, %arg0, %c0_i32_12 : i32
      %c5_i32 = arith.constant 5 : i32
      %16 = arith.subi %c5_i32, %arg7 : i32
      %17 = arith.select %15, %arg7, %16 : i32
      %c0_13 = arith.constant 0 : index
      %18 = arith.index_cast %17 : i32 to index
      %c0_14 = arith.constant 0 : index
      %c0_15 = arith.constant 0 : index
      %19 = vector.load %arg2[%c0_13, %18, %c0_14, %c0_15] : memref<1x6x2x64xf32, #tpu.memory_space<vmem>>, vector<1x1x2x64xf32>
      %20 = vector.shape_cast %19 : vector<1x1x2x64xf32> to vector<2x64xf32>
      %21 = arith.truncf %arg8 : vector<2x16xf32> to vector<2x16xbf16>
      %cst_16 = arith.constant dense<0.000000e+00> : vector<2x64xf32>
      %22 = tpu.matmul %21, %1, %cst_16 {dimension_numbers = #tpu.dot_dimension_numbers<[1], [0], [0], [1], [0, 0, 1, 1], [], []>} : vector<2x16xbf16>, vector<16x64xbf16>, vector<2x64xf32> -> vector<2x64xf32>
      %23 = arith.addf %20, %22 : vector<2x64xf32>
      %24 = vector.extract_strided_slice %23 {offsets = [0, 0], sizes = [2, 16], strides = [1, 1]} : vector<2x64xf32> to vector<2x16xf32>
      %25 = arith.negf %24 : vector<2x16xf32>
      %26 = math.exp %25 : vector<2x16xf32>
      %cst_17 = arith.constant 1.000000e+00 : f32
      %27 = vector.broadcast %cst_17 : f32 to vector<2x16xf32>
      %28 = arith.addf %27, %26 : vector<2x16xf32>
      %29 = arith.divf %27, %28 : vector<2x16xf32>
      %30 = vector.extract_strided_slice %23 {offsets = [0, 16], sizes = [2, 16], strides = [1, 1]} : vector<2x64xf32> to vector<2x16xf32>
      %31 = arith.negf %30 : vector<2x16xf32>
      %32 = math.exp %31 : vector<2x16xf32>
      %cst_18 = arith.constant 1.000000e+00 : f32
      %33 = vector.broadcast %cst_18 : f32 to vector<2x16xf32>
      %34 = arith.addf %33, %32 : vector<2x16xf32>
      %35 = arith.divf %33, %34 : vector<2x16xf32>
      %36 = vector.extract_strided_slice %23 {offsets = [0, 32], sizes = [2, 16], strides = [1, 1]} : vector<2x64xf32> to vector<2x16xf32>
      %37 = math.tanh %36 : vector<2x16xf32>
      %38 = vector.extract_strided_slice %23 {offsets = [0, 48], sizes = [2, 16], strides = [1, 1]} : vector<2x64xf32> to vector<2x16xf32>
      %39 = arith.negf %38 : vector<2x16xf32>
      %40 = math.exp %39 : vector<2x16xf32>
      %cst_19 = arith.constant 1.000000e+00 : f32
      %41 = vector.broadcast %cst_19 : f32 to vector<2x16xf32>
      %42 = arith.addf %41, %40 : vector<2x16xf32>
      %43 = arith.divf %41, %42 : vector<2x16xf32>
      %44 = arith.mulf %35, %arg9 : vector<2x16xf32>
      %45 = arith.mulf %29, %37 : vector<2x16xf32>
      %46 = arith.addf %44, %45 : vector<2x16xf32>
      %47 = math.tanh %46 : vector<2x16xf32>
      %48 = arith.mulf %43, %47 : vector<2x16xf32>
      %49 = vector.broadcast %17 : i32 to vector<2x16xi32>
      %50 = arith.cmpi slt, %49, %4 : vector<2x16xi32>
      %51 = arith.extui %50 : vector<2x16xi1> to vector<2x16xi32>
      %52 = arith.sitofp %51 : vector<2x16xi32> to vector<2x16xf32>
      %53 = arith.mulf %52, %48 : vector<2x16xf32>
      %c0_20 = arith.constant 0 : index
      %54 = arith.index_cast %17 : i32 to index
      %c0_21 = arith.constant 0 : index
      %c0_22 = arith.constant 0 : index
      %55 = vector.load %arg4[%c0_20, %54, %c0_21, %c0_22] : memref<1x6x2x16xf32, #tpu.memory_space<vmem>>, vector<1x1x2x16xf32>
      %56 = vector.shape_cast %55 : vector<1x1x2x16xf32> to vector<2x16xf32>
      %57 = vector.shape_cast %53 : vector<2x16xf32> to vector<1x1x2x16xf32>
      tpu.vector_store %arg4[%c0_20, %54, %c0_21, %c0_22], %57 {strides = array<i32>} : memref<1x6x2x16xf32, #tpu.memory_space<vmem>>, vector<1x1x2x16xf32>,
      %58 = arith.mulf %52, %48 : vector<2x16xf32>
      %cst_23 = arith.constant 1.000000e+00 : f32
      %59 = vector.broadcast %cst_23 : f32 to vector<2x16xf32>
      %60 = arith.subf %59, %52 : vector<2x16xf32>
      %61 = arith.mulf %60, %arg8 : vector<2x16xf32>
      %62 = arith.addf %58, %61 : vector<2x16xf32>
      %63 = arith.mulf %52, %46 : vector<2x16xf32>
      %cst_24 = arith.constant 1.000000e+00 : f32
      %64 = vector.broadcast %cst_24 : f32 to vector<2x16xf32>
      %65 = arith.subf %64, %52 : vector<2x16xf32>
      %66 = arith.mulf %65, %arg9 : vector<2x16xf32>
      %67 = arith.addf %63, %66 : vector<2x16xf32>
      scf.yield %62, %67 : vector<2x16xf32>, vector<2x16xf32>
    }
    %c6_i32_5 = arith.constant 6 : i32
    %c0_6 = arith.constant 0 : index
    %c0_7 = arith.constant 0 : index
    %c0_8 = arith.constant 0 : index
    %9 = vector.load %arg5[%c0_6, %c0_7, %c0_8] : memref<1x2x16xf32, #tpu.memory_space<vmem>>, vector<1x2x16xf32>
    %10 = vector.shape_cast %9 : vector<1x2x16xf32> to vector<2x16xf32>
    %11 = vector.shape_cast %8#0 : vector<2x16xf32> to vector<1x2x16xf32>
    tpu.vector_store %arg5[%c0_6, %c0_7, %c0_8], %11 {strides = array<i32>} : memref<1x2x16xf32, #tpu.memory_space<vmem>>, vector<1x2x16xf32>,
    %c0_9 = arith.constant 0 : index
    %c0_10 = arith.constant 0 : index
    %c0_11 = arith.constant 0 : index
    %12 = vector.load %arg6[%c0_9, %c0_10, %c0_11] : memref<1x2x16xf32, #tpu.memory_space<vmem>>, vector<1x2x16xf32>
    %13 = vector.shape_cast %12 : vector<1x2x16xf32> to vector<2x16xf32>
    %14 = vector.shape_cast %8#1 : vector<2x16xf32> to vector<1x2x16xf32>
    tpu.vector_store %arg6[%c0_9, %c0_10, %c0_11], %14 {strides = array<i32>} : memref<1x2x16xf32, #tpu.memory_space<vmem>>, vector<1x2x16xf32>,
    return
  }
  func.func @transform_0(%arg0: i32) -> (i32, i32) {
    %c0_i32 = arith.constant 0 : i32
    %c0_i32_0 = arith.constant 0 : i32
    %c0_i32_1 = arith.constant 0 : i32
    return %c0_i32, %c0_i32_0 : i32, i32
  }
  func.func @transform_1(%arg0: i32) -> (i32, i32, i32, i32) {
    %c0_i32 = arith.constant 0 : i32
    %c0_i32_0 = arith.constant 0 : i32
    %c0_i32_1 = arith.constant 0 : i32
    %c0_i32_2 = arith.constant 0 : i32
    return %arg0, %c0_i32, %c0_i32_0, %c0_i32_1 : i32, i32, i32, i32
  }
  func.func @transform_2(%arg0: i32) -> (i32, i32, i32) {
    %c0_i32 = arith.constant 0 : i32
    %c0_i32_0 = arith.constant 0 : i32
    %c0_i32_1 = arith.constant 0 : i32
    return %arg0, %c0_i32, %c0_i32_0 : i32, i32, i32
  }
  func.func @transform_3(%arg0: i32) -> (i32, i32, i32, i32) {
    %c0_i32 = arith.constant 0 : i32
    %c0_i32_0 = arith.constant 0 : i32
    %c0_i32_1 = arith.constant 0 : i32
    %c0_i32_2 = arith.constant 0 : i32
    return %arg0, %c0_i32, %c0_i32_0, %c0_i32_1 : i32, i32, i32, i32
  }
  func.func @transform_4(%arg0: i32) -> (i32, i32, i32) {
    %c0_i32 = arith.constant 0 : i32
    %c0_i32_0 = arith.constant 0 : i32
    %c0_i32_1 = arith.constant 0 : i32
    return %arg0, %c0_i32, %c0_i32_0 : i32, i32, i32
  }
  func.func @transform_5(%arg0: i32) -> (i32, i32, i32) {
    %c0_i32 = arith.constant 0 : i32
    %c0_i32_0 = arith.constant 0 : i32
    %c0_i32_1 = arith.constant 0 : i32
    return %arg0, %c0_i32, %c0_i32_0 : i32, i32, i32
  }
}

</mosaic_0001>

<llo_original>
// kernel: distractor_encoder_forward.3
$region0: #{distractor_encoder_forward.3}
  #allocation0 [shape = 'u32[]', space=smem, size = 0x4, offset = 0x4, fixed_abs, tag = 'smem constant byte address 0x4 - core index']
  #allocation1 [shape = 'u32[144,128]{1,0:T(1,128)}', space=vmem, size = 0x12000, scoped, tag = 'internal scratch']
  %s0 = inlined_call_operand.vmem [shape: s32[6,1], index: 0, kind: input, shape index: {}]
  %s1 = inlined_call_operand.vmem [shape: f32[2,8,6,64], index: 1, kind: input, shape index: {}]
  %s2 = inlined_call_operand.vmem [shape: bf16[2,16,64], index: 2, kind: input, shape index: {}]
  %s3 = inlined_call_operand.vmem [shape: f32[2,8,6,16], index: 3, kind: output, shape index: {0}]
  %s4 = inlined_call_operand.vmem [shape: f32[2,6,16], index: 4, kind: output, shape index: {1}]
  %s5 = inlined_call_operand.hbm [shape: f32[2,6,16], index: 5, kind: output, shape index: {2}]
  %6 = xla_tuple %s3, %s4, %s5
  %s7 = sld [smem:[#allocation0]]
  $region68: #{distractor_encoder_forward.3} parent=0
    _
  %s9 = ssub.s32 1, %s7
  %s10 = scalar_select 0, %s9, %s7
  $region1: #{distractor_encoder_forward.3} parent=0
    #allocation2 [shape = 'u8[8192]{0}', space=vmem, size = 0x2000, scoped, tag = 'output window, operand 2']
    #allocation3 [shape = 's32[2]{0}', space=sflag, size = 0x8, scoped, tag = 'scoped memory for distractor_encoder_forward.3']
    %11 = vsyncpa [#allocation3], 0
    %s12 = scalar_lea.sflag [#allocation3], 1
    %13 = vsyncpa %s12, 0
    loop: start=0, step=1, limit=4
    $region2: #{distractor_encoder_forward.3} parent=1 // loop_pre_header
      _
    $region3: #{distractor_encoder_forward.3} parent=1 // loop_header
      %s15 = sphi 0, %s19
      %p16 = scmp.ge.s32.totalorder %s15, 4
      %s23 = sphi 0, %s23
      %s25 = sphi 0, %s23
      %s26 = sphi 0, %s25
      %s40 = sphi 0, %s26
      %s46 = sphi 0, %s48
      %s49 = sphi 0, %s46
      %s50 = sphi 0, %s49
      %s66 = sphi 0, %s50
      %s72 = sphi 0, %s74
      %s75 = sphi 0, %s72
      %s76 = sphi 0, %s75
      %s92 = sphi 0, %s76
      %s98 = sphi 0, %s100
      %s101 = sphi 0, %s98
      %s102 = sphi 0, %s101
      %s118 = sphi 0, %s102
      %s124 = sphi 0, %s126
      %s127 = sphi 0, %s124
      %s128 = sphi 0, %s127
      %s144 = sphi 0, %s128
      %s150 = sphi 0, %s152
      %s153 = sphi 0, %s150
      %s154 = sphi 0, %s153
      %s170 = sphi 0, %s154
    $region4: #{distractor_encoder_forward.3} parent=1 // loop_header_branch
      %18 = sbr.rel (%p16) target = $region8
    $region5: #{distractor_encoder_forward.3} parent=1 // loop_body
      %s20 = ssub.s32 %s15, 1
      %s21 = ssub.s32 %s15, 2
      %s22 = sadd.s32 %s15, 1
      %s24 = sadd.s32 %s23, 1
      %p27 = scmp.eq.s32.totalorder %s15, 1
      %p28 = scmp.ne.s32.totalorder %s23, %s25
      %p29 = scmp.eq.s32.totalorder %s15, 0
      %p30 = por %p28, %p29
      %p31 = scmp.ne.s32.totalorder %s23, %s25
      %p32 = scmp.eq.s32.totalorder %s20, 1
      %p33 = por %p31, %p32
      %p34 = scmp.ne.s32.totalorder %s25, %s26
      %p35 = scmp.eq.s32.totalorder %s20, 0
      %p36 = por %p34, %p35
      %p37 = scmp.ne.s32.totalorder %s25, %s26
      %p38 = scmp.eq.s32.totalorder %s21, 1
      %p39 = por %p37, %p38
      %p41 = scmp.ne.s32.totalorder %s26, %s40
      %p42 = scmp.eq.s32.totalorder %s21, 0
      %p43 = por %p41, %p42
      %s44 = ssub.s32 %s15, %s22
      %p45 = scmp.eq.s32.totalorder %s44, 0
      %s47 = sadd.s32 %s46, 1
      %s48 = scalar_select %p45, %s46, %s47
      %p51 = pneg %p45
      %p52 = scmp.eq.s32.totalorder %s15, 1
      %p53 = por %p51, %p52
      %p54 = scmp.ne.s32.totalorder %s46, %s49
      %p55 = scmp.eq.s32.totalorder %s15, 0
      %p56 = por %p54, %p55
      %p57 = scmp.ne.s32.totalorder %s46, %s49
      %p58 = scmp.eq.s32.totalorder %s20, 1
      %p59 = por %p57, %p58
      %p60 = scmp.ne.s32.totalorder %s49, %s50
      %p61 = scmp.eq.s32.totalorder %s20, 0
      %p62 = por %p60, %p61
      %p63 = scmp.ne.s32.totalorder %s49, %s50
      %p64 = scmp.eq.s32.totalorder %s21, 1
      %p65 = por %p63, %p64
      %p67 = scmp.ne.s32.totalorder %s50, %s66
      %p68 = scmp.eq.s32.totalorder %s21, 0
      %p69 = por %p67, %p68
      %s70 = ssub.s32 %s15, %s22
      %p71 = scmp.eq.s32.totalorder %s70, 0
      %s73 = sadd.s32 %s72, 1
      %s74 = scalar_select %p71, %s72, %s73
      %p77 = pneg %p71
      %p78 = scmp.eq.s32.totalorder %s15, 1
      %p79 = por %p77, %p78
      %p80 = scmp.ne.s32.totalorder %s72, %s75
      %p81 = scmp.eq.s32.totalorder %s15, 0
      %p82 = por %p80, %p81
      %p83 = scmp.ne.s32.totalorder %s72, %s75
      %p84 = scmp.eq.s32.totalorder %s20, 1
      %p85 = por %p83, %p84
      %p86 = scmp.ne.s32.totalorder %s75, %s76
      %p87 = scmp.eq.s32.totalorder %s20, 0
      %p88 = por %p86, %p87
      %p89 = scmp.ne.s32.totalorder %s75, %s76
      %p90 = scmp.eq.s32.totalorder %s21, 1
      %p91 = por %p89, %p90
      %p93 = scmp.ne.s32.totalorder %s76, %s92
      %p94 = scmp.eq.s32.totalorder %s21, 0
      %p95 = por %p93, %p94
      %s96 = ssub.s32 %s15, %s22
      %p97 = scmp.eq.s32.totalorder %s96, 0
      %s99 = sadd.s32 %s98, 1
      %s100 = scalar_select %p97, %s98, %s99
      %p103 = pneg %p97
      %p104 = scmp.eq.s32.totalorder %s15, 1
      %p105 = por %p103, %p104
      %p106 = scmp.ne.s32.totalorder %s98, %s101
      %p107 = scmp.eq.s32.totalorder %s15, 0
      %p108 = por %p106, %p107
      %p109 = scmp.ne.s32.totalorder %s98, %s101
      %p110 = scmp.eq.s32.totalorder %s20, 1
      %p111 = por %p109, %p110
      %p112 = scmp.ne.s32.totalorder %s101, %s102
      %p113 = scmp.eq.s32.totalorder %s20, 0
      %p114 = por %p112, %p113
      %p115 = scmp.ne.s32.totalorder %s101, %s102
      %p116 = scmp.eq.s32.totalorder %s21, 1
      %p117 = por %p115, %p116
      %p119 = scmp.ne.s32.totalorder %s102, %s118
      %p120 = scmp.eq.s32.totalorder %s21, 0
      %p121 = por %p119, %p120
      %s122 = ssub.s32 %s15, %s22
      %p123 = scmp.eq.s32.totalorder %s122, 0
      %s125 = sadd.s32 %s124, 1
      %s126 = scalar_select %p123, %s124, %s125
      %p129 = pneg %p123
      %p130 = scmp.eq.s32.totalorder %s15, 1
      %p131 = por %p129, %p130
      %p132 = scmp.ne.s32.totalorder %s124, %s127
      %p133 = scmp.eq.s32.totalorder %s15, 0
      %p134 = por %p132, %p133
      %p135 = scmp.ne.s32.totalorder %s124, %s127
      %p136 = scmp.eq.s32.totalorder %s20, 1
      %p137 = por %p135, %p136
      %p138 = scmp.ne.s32.totalorder %s127, %s128
      %p139 = scmp.eq.s32.totalorder %s20, 0
      %p140 = por %p138, %p139
      %p141 = scmp.ne.s32.totalorder %s127, %s128
      %p142 = scmp.eq.s32.totalorder %s21, 1
      %p143 = por %p141, %p142
      %p145 = scmp.ne.s32.totalorder %s128, %s144
      %p146 = scmp.eq.s32.totalorder %s21, 0
      %p147 = por %p145, %p146
      %s148 = ssub.s32 %s15, %s22
      %p149 = scmp.eq.s32.totalorder %s148, 0
      %s151 = sadd.s32 %s150, 1
      %s152 = scalar_select %p149, %s150, %s151
      %p155 = pneg %p149
      %p156 = scmp.eq.s32.totalorder %s15, 1
      %p157 = por %p155, %p156
      %p158 = scmp.ne.s32.totalorder %s150, %s153
      %p159 = scmp.eq.s32.totalorder %s15, 0
      %p160 = por %p158, %p159
      %p161 = scmp.ne.s32.totalorder %s150, %s153
      %p162 = scmp.eq.s32.totalorder %s20, 1
      %p163 = por %p161, %p162
      %p164 = scmp.ne.s32.totalorder %s153, %s154
      %p165 = scmp.eq.s32.totalorder %s20, 0
      %p166 = por %p164, %p165
      %p167 = scmp.ne.s32.totalorder %s153, %s154
      %p168 = scmp.eq.s32.totalorder %s21, 1
      %p169 = por %p167, %p168
      %p171 = scmp.ne.s32.totalorder %s154, %s170
      %p172 = scmp.eq.s32.totalorder %s21, 0
      %p173 = por %p171, %p172
      %p174 = scmp.le.s32.totalorder 1, %s15
      %p175 = scmp.lt.s32.totalorder %s15, 3
      %p176 = pnand %p174, %p175
      %p177 = pneg %p176
      // Predicated region
      $region9: #{distractor_encoder_forward.3} parent=5 // pred_check
        _
      $region10: #{distractor_encoder_forward.3} parent=5 // pred_check_branch
        %179 = sbr.rel (%p176) target = $region12
      $region11: #{distractor_encoder_forward.3} parent=5 // pred_region
        %s180 = ssub.s32 %s15, 1
        // Predicated region
        $region13: #{distractor_encoder_forward.3} parent=11 // pred_check
          %p181 = pneg %p36
        $region14: #{distractor_encoder_forward.3} parent=11 // pred_check_branch
          %183 = sbr.rel (%p181) target = $region16
        $region15: #{distractor_encoder_forward.3} parent=11 // pred_region
          _
        $region16: #{distractor_encoder_forward.3} parent=11 // pred_fallthru
          _
      $region12: #{distractor_encoder_forward.3} parent=5 // pred_fallthru
        _
      %p184 = scmp.lt.s32.totalorder %s15, 2
      // Predicated region
      $region17: #{distractor_encoder_forward.3} parent=5 // pred_check
        %p185 = pneg %p184
      $region18: #{distractor_encoder_forward.3} parent=5 // pred_check_branch
        %187 = sbr.rel (%p185) target = $region20
      $region19: #{distractor_encoder_forward.3} parent=5 // pred_region
        // Predicated region
        $region21: #{distractor_encoder_forward.3} parent=19 // pred_check
          %p188 = pneg %p56
        $region22: #{distractor_encoder_forward.3} parent=19 // pred_check_branch
          %190 = sbr.rel (%p188) target = $region24
        $region23: #{distractor_encoder_forward.3} parent=19 // pred_region
          %p191 = scmp.lt.s32.totalorder %s15, 1
          %s192 = scalar_select %p191, %s15, 1
          %s193 = smul.addr %s192, 8
          %s194 = smul.addr %s193, 8
          %s195 = scalar_lea.vmem %s1, %s194
        $region24: #{distractor_encoder_forward.3} parent=19 // pred_fallthru
          _
        // Predicated region
        $region25: #{distractor_encoder_forward.3} parent=19 // pred_check
          %p196 = pneg %p82
        $region26: #{distractor_encoder_forward.3} parent=19 // pred_check_branch
          %198 = sbr.rel (%p196) target = $region28
        $region27: #{distractor_encoder_forward.3} parent=19 // pred_region
          %p199 = scmp.lt.s32.totalorder %s15, 1
          %s200 = scalar_select %p199, %s15, 1
          %s201 = smul.addr %s200, 2
          %s202 = smul.addr %s201, 4
          %s203 = scalar_lea.vmem %s2, %s202
        $region28: #{distractor_encoder_forward.3} parent=19 // pred_fallthru
          _
      $region20: #{distractor_encoder_forward.3} parent=5 // pred_fallthru
        _
      %p204 = scmp.le.s32.totalorder 1, %s15
      %p205 = scmp.lt.s32.totalorder %s15, 3
      %p206 = pnand %p204, %p205
      %p207 = pneg %p206
      // Predicated region
      $region29: #{distractor_encoder_forward.3} parent=5 // pred_check
        _
      $region30: #{distractor_encoder_forward.3} parent=5 // pred_check_branch
        %209 = sbr.rel (%p206) target = $region32
      $region31: #{distractor_encoder_forward.3} parent=5 // pred_region
        %s210 = ssub.s32 %s15, 1
        %p211 = pneg %p36
        %p212 = pneg %p33
        %p213 = scmp.lt.s32.totalorder %s20, 1
        %s214 = scalar_select %p213, %s20, 1
        %s215 = smul.addr %s214, 8
        %s216 = smul.addr %s215, 8
        %s217 = scalar_lea.vmem %s1, %s216
        %p218 = pneg %p62
        %p219 = pneg %p59
        %p220 = scmp.lt.s32.totalorder %s20, 1
        %s221 = scalar_select %p220, %s20, 1
        %s222 = smul.addr %s221, 2
        %s223 = smul.addr %s222, 4
        %s224 = scalar_lea.vmem %s2, %s223
        %p225 = pneg %p88
        %p226 = pneg %p85
        %p227 = pneg %p114
        %p228 = pneg %p111
        %p229 = scmp.lt.s32.totalorder %s20, 1
        %s230 = scalar_select %p229, %s20, 1
        %s231 = smul.addr %s230, 8
        %s232 = smul.addr %s231, 8
        %s233 = scalar_lea.vmem %s3, %s232
        %p234 = pneg %p140
        %p235 = pneg %p137
        %p236 = scmp.lt.s32.totalorder %s20, 1
        %s237 = scalar_select %p236, %s20, 1
        %s238 = smul.addr %s237, 8
        %s239 = scalar_lea.vmem %s4, %s238
        %p240 = pneg %p166
        %p241 = pneg %p163
        %s242 = sand.u32 %s153, 1
        %s243 = scalar_lea.sflag [#allocation3], %s242
        %s244 = sand.u32 %s153, 1
        %s245 = smul.addr %s244, 8
        %s246 = scalar_lea.vmem [#allocation2], %s245
        %p247 = scmp.lt.s32.totalorder %s20, 1
        %s248 = scalar_select %p247, %s20, 1
        %s249 = smul.addr %s248, 8
        %s250 = smul.addr %s249, 8
        %s251 = scalar_lea.vmem %s1, %s250
        %p252 = scmp.lt.s32.totalorder %s20, 1
        %s253 = scalar_select %p252, %s20, 1
        %s254 = smul.addr %s253, 2
        %s255 = smul.addr %s254, 4
        %s256 = scalar_lea.vmem %s2, %s255
        %p257 = scmp.lt.s32.totalorder %s20, 1
        %s258 = scalar_select %p257, %s20, 1
        %s259 = smul.addr %s258, 8
        %s260 = smul.addr %s259, 8
        %s261 = scalar_lea.vmem %s3, %s260
        %p262 = scmp.lt.s32.totalorder %s20, 1
        %s263 = scalar_select %p262, %s20, 1
        %s264 = smul.addr %s263, 8
        %s265 = scalar_lea.vmem %s4, %s264
        %v267 = vld [vmem:[%s256] sm:$0xf]
        %v268 = vld [vmem:[%s256 + $0x4] sm:$0xf]
        %v269 = vld [vmem:[%s0] sm:$0x3f]
        %270 = vset.pattern.permute.xlu0 0
        %271 = vperm.xlu0 %270, %v269
        %v272 = vpop.permute.xlu0 %271
        loop: start=0, step=1, limit=8
        $region33: #{distractor_encoder_forward.3} parent=31 // loop_pre_header
          _
        $region34: #{distractor_encoder_forward.3} parent=31 // loop_header
          %s274 = sphi 0, %s278
          %p275 = scmp.ge.s32.totalorder %s274, 8
          %v279 = vphi 0.0, %v380
          %v280 = vphi 0.0, %v383
        $region35: #{distractor_encoder_forward.3} parent=31 // loop_header_branch
          %277 = sbr.rel (%p275) target = $region39
        $region36: #{distractor_encoder_forward.3} parent=31 // loop_body
          %p281 = scmp.eq.s32.totalorder %s20, 0
          %s282 = ssub.s32 7, %s274
          %s283 = scalar_select %p281, %s274, %s282
          %s284 = smul.u32 %s283, 8
          %s285 = scalar_lea.vmem %s251, %s284
          %v286 = vld [vmem:[%s285] sm:$0x3f]
          %v287 = vpack.c.bf16 %v279, %v279
          %289 = vrot.lane.b32.xlu0 %v287, 80
          %v290 = vpop.permute.xlu0 %289
          %v293 = vunpack.c.l.b16 %v267
          %v294 = vunpack.c.l.b16 %v268
          %v295 = vpack.c.b16 %v294, %v293
          %vm297 = vcmask 130048
          %v299 = vsel %vm297, %v290, 0
          %301 = vmatprep.subr.bf16.mxu0 0
          %302 = vmatpush1.bf16.msra.mxu0 0
          %303 = vmatprep.subr.bf16.mxu0 0
          %304 = vmatpush1.bf16.msra.mxu0 0
          %305 = vmatprep.subr.bf16.mxu0 0
          %306 = vmatpush1.bf16.msra.mxu0 0
          %307 = vmatprep.subr.bf16.mxu0 0
          %308 = vmatpush1.bf16.msra.mxu0 0
          %309 = vmatprep.subr.bf16.mxu0 0
          %310 = vmatpush1.bf16.msra.mxu0 0
          %311 = vmatprep.subr.bf16.mxu0 0
          %312 = vmatpush1.bf16.msra.mxu0 0
          %313 = vmatprep.subr.bf16.mxu0 0
          %314 = vmatpush1.bf16.msra.mxu0 0
          %315 = vmatprep.subr.bf16.mxu0 0
          %316 = vmatpush1.bf16.msra.mxu0 %v295
          %317 = vmatprep.subr.bf16.mxu0 0
          %318 = vmatpush2.bf16.msra.mxu0 0
          %319 = vmatprep.subr.bf16.mxu0 0
          %320 = vmatpush2.bf16.msra.mxu0 0
          %321 = vmatprep.subr.bf16.mxu0 0
          %322 = vmatpush2.bf16.msra.mxu0 0
          %323 = vmatprep.subr.bf16.mxu0 0
          %324 = vmatpush2.bf16.msra.mxu0 0
          %325 = vmatprep.subr.bf16.mxu0 0
          %326 = vmatpush2.bf16.msra.mxu0 0
          %327 = vmatprep.subr.bf16.mxu0 0
          %328 = vmatpush2.bf16.msra.mxu0 0
          %329 = vmatprep.subr.bf16.mxu0 0
          %330 = vmatpush2.bf16.msra.mxu0 0
          %331 = vmatprep.subr.bf16.mxu0 0
          %332 = vmatpush2.bf16.msra.mxu0 0
          %333 = vmatprep.mubr.bf16.mxu0 0
          %334 = vmatmul.mubr.bf16.gmra.mxu0 %v299
          %v335 = vpop.f32.mrf.mxu0
          %v336 = vadd.f32 0.0, %v335
          %v337 = vpop.f32.mrf.mxu0
          %v338 = vpop.f32.mrf.mxu0
          %v339 = vpop.f32.mrf.mxu0
          %340 = vdwg.mxu0
          %v341 = vadd.f32 %v286, %v336
          %v342 = vxor.u32 %v341, 2147483648
          %v343 = vmul.f32 %v342, 1.442695
          %v344 = vpow.pop %v343
          %v345 = vadd.f32 %v344, 1.0
          %v346 = vrcp.pop %v345
          %v347 = vmul.f32 1.0, %v346
          %v348 = vtanh.pop %v341
          %v349 = vmul.f32 %v347, %v280
          %351 = vrot.lane.b32.xlu0 %v348, 96
          %v352 = vpop.permute.xlu0 %351
          %v354 = vmul.f32 %v347, %v352
          %356 = vrot.lane.b32.xlu0 %v354, 16
          %v357 = vpop.permute.xlu0 %356
          %v359 = vadd.f32 %v349, %v357
          %v360 = vtanh.pop %v359
          %362 = vrot.lane.b32.xlu0 %v360, 32
          %v363 = vpop.permute.xlu0 %362
          %v365 = vmul.f32 %v347, %v363
          %v366 = vstv %s283
          %vm367 = vcmp.lt.s32.totalorder %v366, %v272
          %v368 = vsel %vm367, 1, 0
          %v369 = vcvt.s32.f32 %v368
          %v370 = vmul.f32 %v369, %v365
          %372 = vrot.lane.b32.xlu0 %v370, 80
          %v373 = vpop.permute.xlu0 %372
          %s375 = scalar_lea.vmem %s261, %s284
          %vm376 = vcmask 128000
          %377 = vst.msk [vmem:[%s375] sm:$0x3f] %vm376, %v373
          %v378 = vsub.f32 1.0, %v369
          %v379 = vmul.f32 %v378, %v279
          %v380 = vadd.f32 %v370, %v379
          %v381 = vmul.f32 %v369, %v359
          %v382 = vmul.f32 %v378, %v280
          %v383 = vadd.f32 %v381, %v382
        $region37: #{distractor_encoder_forward.3} parent=31 // loop_footer
          %s278 = sadd.s32 1, %s274
        $region38: #{distractor_encoder_forward.3} parent=31 // loop_footer_branch
          %273 = sbr.rel target = $region34
        $region39: #{distractor_encoder_forward.3} parent=31 // loop_exit
          _
        %385 = vrot.lane.b32.xlu0 %v279, 80
        %v386 = vpop.permute.xlu0 %385
        %vm388 = vcmask 128000
        %389 = vst.msk [vmem:[%s265] sm:$0x3f] %vm388, %v386
        %391 = vrot.lane.b32.xlu0 %v280, 112
        %v392 = vpop.permute.xlu0 %391
        %394 = vst.msk [vmem:[%s246] sm:$0x3f] %vm388, %v392
        %p395 = scmp.lt.s32.totalorder %s20, 1
        %s396 = scalar_select %p395, %s20, 1
        %s397 = smul.addr %s396, 8
        %s398 = smul.addr %s397, 8
        %s399 = scalar_lea.vmem %s3, %s398
        %p400 = scmp.lt.s32.totalorder %s20, 1
        %s401 = scalar_select %p400, %s20, 1
        %s402 = smul.addr %s401, 8
        %s403 = scalar_lea.vmem %s4, %s402
        %s404 = sand.u32 %s153, 1
        %s405 = scalar_lea.sflag [#allocation3], %s404
        %s406 = sand.u32 %s153, 1
        %s407 = smul.addr %s406, 8
        %s408 = scalar_lea.vmem [#allocation2], %s407
        // Predicated region
        $region40: #{distractor_encoder_forward.3} parent=31 // pred_check
          %p409 = pneg %p111
        $region41: #{distractor_encoder_forward.3} parent=31 // pred_check_branch
          %411 = sbr.rel (%p409) target = $region43
        $region42: #{distractor_encoder_forward.3} parent=31 // pred_region
          _
        $region43: #{distractor_encoder_forward.3} parent=31 // pred_fallthru
          _
        // Predicated region
        $region44: #{distractor_encoder_forward.3} parent=31 // pred_check
          %p412 = pneg %p137
        $region45: #{distractor_encoder_forward.3} parent=31 // pred_check_branch
          %414 = sbr.rel (%p412) target = $region47
        $region46: #{distractor_encoder_forward.3} parent=31 // pred_region
          _
        $region47: #{distractor_encoder_forward.3} parent=31 // pred_fallthru
          _
        // Predicated region
        $region48: #{distractor_encoder_forward.3} parent=31 // pred_check
          %p415 = pneg %p163
        $region49: #{distractor_encoder_forward.3} parent=31 // pred_check_branch
          %417 = sbr.rel (%p415) target = $region51
        $region50: #{distractor_encoder_forward.3} parent=31 // pred_region
          %s419 = ssub.s32 128, 128
          %420 = vsyncadd %s405, %s419
          %s421 = smul.addr %s20, 128
          %s422 = scalar_lea.hbm %s5, %s421
          %s424 = sshll.u32 %s408, 4
          %s425 = int_to_ptr.vmem [resolvable:$true] %s424
          %427 = dma.vmem_to_hbm [thread:$0]  %s425, 128, %s422, %s405
        $region51: #{distractor_encoder_forward.3} parent=31 // pred_fallthru
          _
      $region32: #{distractor_encoder_forward.3} parent=5 // pred_fallthru
        _
      %p428 = scmp.le.s32.totalorder 2, %s15
      // Predicated region
      $region52: #{distractor_encoder_forward.3} parent=5 // pred_check
        %p429 = pneg %p428
      $region53: #{distractor_encoder_forward.3} parent=5 // pred_check_branch
        %431 = sbr.rel (%p429) target = $region55
      $region54: #{distractor_encoder_forward.3} parent=5 // pred_region
        %s432 = ssub.s32 %s15, 2
        // Predicated region
        $region56: #{distractor_encoder_forward.3} parent=54 // pred_check
          %p433 = pneg %p117
        $region57: #{distractor_encoder_forward.3} parent=54 // pred_check_branch
          %435 = sbr.rel (%p433) target = $region59
        $region58: #{distractor_encoder_forward.3} parent=54 // pred_region
          %p436 = scmp.lt.s32.totalorder %s21, 1
          %s437 = scalar_select %p436, %s21, 1
          %s438 = smul.addr %s437, 8
          %s439 = smul.addr %s438, 8
          %s440 = scalar_lea.vmem %s3, %s439
        $region59: #{distractor_encoder_forward.3} parent=54 // pred_fallthru
          _
        // Predicated region
        $region60: #{distractor_encoder_forward.3} parent=54 // pred_check
          %p441 = pneg %p143
        $region61: #{distractor_encoder_forward.3} parent=54 // pred_check_branch
          %443 = sbr.rel (%p441) target = $region63
        $region62: #{distractor_encoder_forward.3} parent=54 // pred_region
          %p444 = scmp.lt.s32.totalorder %s21, 1
          %s445 = scalar_select %p444, %s21, 1
          %s446 = smul.addr %s445, 8
          %s447 = scalar_lea.vmem %s4, %s446
        $region63: #{distractor_encoder_forward.3} parent=54 // pred_fallthru
          _
        // Predicated region
        $region64: #{distractor_encoder_forward.3} parent=54 // pred_check
          %p448 = pneg %p169
        $region65: #{distractor_encoder_forward.3} parent=54 // pred_check_branch
          %450 = sbr.rel (%p448) target = $region67
        $region66: #{distractor_encoder_forward.3} parent=54 // pred_region
          %s451 = sand.u32 %s154, 1
          %s452 = scalar_lea.sflag [#allocation3], %s451
          %s453 = sand.u32 %s154, 1
          %s454 = smul.addr %s453, 8
          %s455 = scalar_lea.vmem [#allocation2], %s454
          %456 = dma.done %s452, 128
        $region67: #{distractor_encoder_forward.3} parent=54 // pred_fallthru
          _
      $region55: #{distractor_encoder_forward.3} parent=5 // pred_fallthru
        _
    $region6: #{distractor_encoder_forward.3} parent=1 // loop_footer
      %s19 = sadd.s32 1, %s15
    $region7: #{distractor_encoder_forward.3} parent=1 // loop_footer_branch
      %14 = sbr.rel target = $region3
    $region8: #{distractor_encoder_forward.3} parent=1 // loop_exit
      _
    %457 = vsyncpa [#allocation3], 1
    %s458 = scalar_lea.sflag [#allocation3], 1
    %459 = vsyncpa %s458, 1

// kernel: distractor_encoder_forward.5
$region0: #{distractor_encoder_forward.5}
  #allocation0 [shape = 'u32[]', space=smem, size = 0x4, offset = 0x4, fixed_abs, tag = 'smem constant byte address 0x4 - core index']
  #allocation1 [shape = 'u32[144,128]{1,0:T(1,128)}', space=vmem, size = 0x12000, scoped, tag = 'internal scratch']
  %s0 = inlined_call_operand.vmem [shape: s32[2,1], index: 0, kind: input, shape index: {}]
  %s1 = inlined_call_operand.vmem [shape: f32[2,6,2,64], index: 1, kind: input, shape index: {}]
  %s2 = inlined_call_operand.vmem [shape: bf16[2,16,64], index: 2, kind: input, shape index: {}]
  %s3 = inlined_call_operand.hbm [shape: f32[2,6,2,16], index: 3, kind: output, shape index: {0}]
  %s4 = inlined_call_operand.hbm [shape: f32[2,2,16], index: 4, kind: output, shape index: {1}]
  %s5 = inlined_call_operand.hbm [shape: f32[2,2,16], index: 5, kind: output, shape index: {2}]
  %6 = xla_tuple %s3, %s4, %s5
  %s7 = sld [smem:[#allocation0]]
  $region68: #{distractor_encoder_forward.5} parent=0
    _
  %s9 = ssub.s32 1, %s7
  %s10 = scalar_select 0, %s9, %s7
  $region1: #{distractor_encoder_forward.5} parent=0
    #allocation2 [shape = 'u8[12288]{0}', space=vmem, size = 0x3000, scoped, tag = 'output window, operand 0']
    #allocation3 [shape = 's32[2]{0}', space=sflag, size = 0x8, scoped, tag = 'scoped memory for distractor_encoder_forward.5']
    #allocation4 [shape = 'u8[2048]{0}', space=vmem, size = 0x800, scoped, tag = 'output window, operand 1']
    #allocation5 [shape = 's32[2]{0}', space=sflag, size = 0x8, scoped, tag = 'scoped memory for distractor_encoder_forward.5']
    #allocation6 [shape = 'u8[2048]{0}', space=vmem, size = 0x800, scoped, tag = 'output window, operand 2']
    %11 = vsyncpa [#allocation3], 0
    %s12 = scalar_lea.sflag [#allocation3], 1
    %13 = vsyncpa %s12, 0
    %14 = vsyncpa [#allocation5], 0
    %s15 = scalar_lea.sflag [#allocation5], 1
    %16 = vsyncpa %s15, 0
    loop: start=0, step=1, limit=4
    $region2: #{distractor_encoder_forward.5} parent=1 // loop_pre_header
      _
    $region3: #{distractor_encoder_forward.5} parent=1 // loop_header
      %s18 = sphi 0, %s22
      %p19 = scmp.ge.s32.totalorder %s18, 4
      %s26 = sphi 0, %s26
      %s28 = sphi 0, %s26
      %s29 = sphi 0, %s28
      %s43 = sphi 0, %s29
      %s49 = sphi 0, %s51
      %s52 = sphi 0, %s49
      %s53 = sphi 0, %s52
      %s69 = sphi 0, %s53
      %s75 = sphi 0, %s77
      %s78 = sphi 0, %s75
      %s79 = sphi 0, %s78
      %s95 = sphi 0, %s79
      %s101 = sphi 0, %s103
      %s104 = sphi 0, %s101
      %s105 = sphi 0, %s104
      %s121 = sphi 0, %s105
      %s127 = sphi 0, %s129
      %s130 = sphi 0, %s127
      %s131 = sphi 0, %s130
      %s147 = sphi 0, %s131
      %s153 = sphi 0, %s155
      %s156 = sphi 0, %s153
      %s157 = sphi 0, %s156
      %s173 = sphi 0, %s157
    $region4: #{distractor_encoder_forward.5} parent=1 // loop_header_branch
      %21 = sbr.rel (%p19) target = $region8
    $region5: #{distractor_encoder_forward.5} parent=1 // loop_body
      %s23 = ssub.s32 %s18, 1
      %s24 = ssub.s32 %s18, 2
      %s25 = sadd.s32 %s18, 1
      %s27 = sadd.s32 %s26, 1
      %p30 = scmp.eq.s32.totalorder %s18, 1
      %p31 = scmp.ne.s32.totalorder %s26, %s28
      %p32 = scmp.eq.s32.totalorder %s18, 0
      %p33 = por %p31, %p32
      %p34 = scmp.ne.s32.totalorder %s26, %s28
      %p35 = scmp.eq.s32.totalorder %s23, 1
      %p36 = por %p34, %p35
      %p37 = scmp.ne.s32.totalorder %s28, %s29
      %p38 = scmp.eq.s32.totalorder %s23, 0
      %p39 = por %p37, %p38
      %p40 = scmp.ne.s32.totalorder %s28, %s29
      %p41 = scmp.eq.s32.totalorder %s24, 1
      %p42 = por %p40, %p41
      %p44 = scmp.ne.s32.totalorder %s29, %s43
      %p45 = scmp.eq.s32.totalorder %s24, 0
      %p46 = por %p44, %p45
      %s47 = ssub.s32 %s18, %s25
      %p48 = scmp.eq.s32.totalorder %s47, 0
      %s50 = sadd.s32 %s49, 1
      %s51 = scalar_select %p48, %s49, %s50
      %p54 = pneg %p48
      %p55 = scmp.eq.s32.totalorder %s18, 1
      %p56 = por %p54, %p55
      %p57 = scmp.ne.s32.totalorder %s49, %s52
      %p58 = scmp.eq.s32.totalorder %s18, 0
      %p59 = por %p57, %p58
      %p60 = scmp.ne.s32.totalorder %s49, %s52
      %p61 = scmp.eq.s32.totalorder %s23, 1
      %p62 = por %p60, %p61
      %p63 = scmp.ne.s32.totalorder %s52, %s53
      %p64 = scmp.eq.s32.totalorder %s23, 0
      %p65 = por %p63, %p64
      %p66 = scmp.ne.s32.totalorder %s52, %s53
      %p67 = scmp.eq.s32.totalorder %s24, 1
      %p68 = por %p66, %p67
      %p70 = scmp.ne.s32.totalorder %s53, %s69
      %p71 = scmp.eq.s32.totalorder %s24, 0
      %p72 = por %p70, %p71
      %s73 = ssub.s32 %s18, %s25
      %p74 = scmp.eq.s32.totalorder %s73, 0
      %s76 = sadd.s32 %s75, 1
      %s77 = scalar_select %p74, %s75, %s76
      %p80 = pneg %p74
      %p81 = scmp.eq.s32.totalorder %s18, 1
      %p82 = por %p80, %p81
      %p83 = scmp.ne.s32.totalorder %s75, %s78
      %p84 = scmp.eq.s32.totalorder %s18, 0
      %p85 = por %p83, %p84
      %p86 = scmp.ne.s32.totalorder %s75, %s78
      %p87 = scmp.eq.s32.totalorder %s23, 1
      %p88 = por %p86, %p87
      %p89 = scmp.ne.s32.totalorder %s78, %s79
      %p90 = scmp.eq.s32.totalorder %s23, 0
      %p91 = por %p89, %p90
      %p92 = scmp.ne.s32.totalorder %s78, %s79
      %p93 = scmp.eq.s32.totalorder %s24, 1
      %p94 = por %p92, %p93
      %p96 = scmp.ne.s32.totalorder %s79, %s95
      %p97 = scmp.eq.s32.totalorder %s24, 0
      %p98 = por %p96, %p97
      %s99 = ssub.s32 %s18, %s25
      %p100 = scmp.eq.s32.totalorder %s99, 0
      %s102 = sadd.s32 %s101, 1
      %s103 = scalar_select %p100, %s101, %s102
      %p106 = pneg %p100
      %p107 = scmp.eq.s32.totalorder %s18, 1
      %p108 = por %p106, %p107
      %p109 = scmp.ne.s32.totalorder %s101, %s104
      %p110 = scmp.eq.s32.totalorder %s18, 0
      %p111 = por %p109, %p110
      %p112 = scmp.ne.s32.totalorder %s101, %s104
      %p113 = scmp.eq.s32.totalorder %s23, 1
      %p114 = por %p112, %p113
      %p115 = scmp.ne.s32.totalorder %s104, %s105
      %p116 = scmp.eq.s32.totalorder %s23, 0
      %p117 = por %p115, %p116
      %p118 = scmp.ne.s32.totalorder %s104, %s105
      %p119 = scmp.eq.s32.totalorder %s24, 1
      %p120 = por %p118, %p119
      %p122 = scmp.ne.s32.totalorder %s105, %s121
      %p123 = scmp.eq.s32.totalorder %s24, 0
      %p124 = por %p122, %p123
      %s125 = ssub.s32 %s18, %s25
      %p126 = scmp.eq.s32.totalorder %s125, 0
      %s128 = sadd.s32 %s127, 1
      %s129 = scalar_select %p126, %s127, %s128
      %p132 = pneg %p126
      %p133 = scmp.eq.s32.totalorder %s18, 1
      %p134 = por %p132, %p133
      %p135 = scmp.ne.s32.totalorder %s127, %s130
      %p136 = scmp.eq.s32.totalorder %s18, 0
      %p137 = por %p135, %p136
      %p138 = scmp.ne.s32.totalorder %s127, %s130
      %p139 = scmp.eq.s32.totalorder %s23, 1
      %p140 = por %p138, %p139
      %p141 = scmp.ne.s32.totalorder %s130, %s131
      %p142 = scmp.eq.s32.totalorder %s23, 0
      %p143 = por %p141, %p142
      %p144 = scmp.ne.s32.totalorder %s130, %s131
      %p145 = scmp.eq.s32.totalorder %s24, 1
      %p146 = por %p144, %p145
      %p148 = scmp.ne.s32.totalorder %s131, %s147
      %p149 = scmp.eq.s32.totalorder %s24, 0
      %p150 = por %p148, %p149
      %s151 = ssub.s32 %s18, %s25
      %p152 = scmp.eq.s32.totalorder %s151, 0
      %s154 = sadd.s32 %s153, 1
      %s155 = scalar_select %p152, %s153, %s154
      %p158 = pneg %p152
      %p159 = scmp.eq.s32.totalorder %s18, 1
      %p160 = por %p158, %p159
      %p161 = scmp.ne.s32.totalorder %s153, %s156
      %p162 = scmp.eq.s32.totalorder %s18, 0
      %p163 = por %p161, %p162
      %p164 = scmp.ne.s32.totalorder %s153, %s156
      %p165 = scmp.eq.s32.totalorder %s23, 1
      %p166 = por %p164, %p165
      %p167 = scmp.ne.s32.totalorder %s156, %s157
      %p168 = scmp.eq.s32.totalorder %s23, 0
      %p169 = por %p167, %p168
      %p170 = scmp.ne.s32.totalorder %s156, %s157
      %p171 = scmp.eq.s32.totalorder %s24, 1
      %p172 = por %p170, %p171
      %p174 = scmp.ne.s32.totalorder %s157, %s173
      %p175 = scmp.eq.s32.totalorder %s24, 0
      %p176 = por %p174, %p175
      %p177 = scmp.le.s32.totalorder 1, %s18
      %p178 = scmp.lt.s32.totalorder %s18, 3
      %p179 = pnand %p177, %p178
      %p180 = pneg %p179
      // Predicated region
      $region9: #{distractor_encoder_forward.5} parent=5 // pred_check
        _
      $region10: #{distractor_encoder_forward.5} parent=5 // pred_check_branch
        %182 = sbr.rel (%p179) target = $region12
      $region11: #{distractor_encoder_forward.5} parent=5 // pred_region
        %s183 = ssub.s32 %s18, 1
        // Predicated region
        $region13: #{distractor_encoder_forward.5} parent=11 // pred_check
          %p184 = pneg %p39
        $region14: #{distractor_encoder_forward.5} parent=11 // pred_check_branch
          %186 = sbr.rel (%p184) target = $region16
        $region15: #{distractor_encoder_forward.5} parent=11 // pred_region
          _
        $region16: #{distractor_encoder_forward.5} parent=11 // pred_fallthru
          _
      $region12: #{distractor_encoder_forward.5} parent=5 // pred_fallthru
        _
      %p187 = scmp.lt.s32.totalorder %s18, 2
      // Predicated region
      $region17: #{distractor_encoder_forward.5} parent=5 // pred_check
        %p188 = pneg %p187
      $region18: #{distractor_encoder_forward.5} parent=5 // pred_check_branch
        %190 = sbr.rel (%p188) target = $region20
      $region19: #{distractor_encoder_forward.5} parent=5 // pred_region
        // Predicated region
        $region21: #{distractor_encoder_forward.5} parent=19 // pred_check
          %p191 = pneg %p59
        $region22: #{distractor_encoder_forward.5} parent=19 // pred_check_branch
          %193 = sbr.rel (%p191) target = $region24
        $region23: #{distractor_encoder_forward.5} parent=19 // pred_region
          %p194 = scmp.lt.s32.totalorder %s18, 1
          %s195 = scalar_select %p194, %s18, 1
          %s196 = smul.addr %s195, 6
          %s197 = smul.addr %s196, 2
          %s198 = scalar_lea.vmem %s1, %s197
        $region24: #{distractor_encoder_forward.5} parent=19 // pred_fallthru
          _
        // Predicated region
        $region25: #{distractor_encoder_forward.5} parent=19 // pred_check
          %p199 = pneg %p85
        $region26: #{distractor_encoder_forward.5} parent=19 // pred_check_branch
          %201 = sbr.rel (%p199) target = $region28
        $region27: #{distractor_encoder_forward.5} parent=19 // pred_region
          %p202 = scmp.lt.s32.totalorder %s18, 1
          %s203 = scalar_select %p202, %s18, 1
          %s204 = smul.addr %s203, 2
          %s205 = smul.addr %s204, 4
          %s206 = scalar_lea.vmem %s2, %s205
        $region28: #{distractor_encoder_forward.5} parent=19 // pred_fallthru
          _
      $region20: #{distractor_encoder_forward.5} parent=5 // pred_fallthru
        _
      %p207 = scmp.le.s32.totalorder 1, %s18
      %p208 = scmp.lt.s32.totalorder %s18, 3
      %p209 = pnand %p207, %p208
      %p210 = pneg %p209
      // Predicated region
      $region29: #{distractor_encoder_forward.5} parent=5 // pred_check
        _
      $region30: #{distractor_encoder_forward.5} parent=5 // pred_check_branch
        %212 = sbr.rel (%p209) target = $region32
      $region31: #{distractor_encoder_forward.5} parent=5 // pred_region
        %s213 = ssub.s32 %s18, 1
        %p214 = pneg %p39
        %p215 = pneg %p36
        %p216 = scmp.lt.s32.totalorder %s23, 1
        %s217 = scalar_select %p216, %s23, 1
        %s218 = smul.addr %s217, 6
        %s219 = smul.addr %s218, 2
        %s220 = scalar_lea.vmem %s1, %s219
        %p221 = pneg %p65
        %p222 = pneg %p62
        %p223 = scmp.lt.s32.totalorder %s23, 1
        %s224 = scalar_select %p223, %s23, 1
        %s225 = smul.addr %s224, 2
        %s226 = smul.addr %s225, 4
        %s227 = scalar_lea.vmem %s2, %s226
        %p228 = pneg %p91
        %p229 = pneg %p88
        %p230 = pneg %p117
        %p231 = pneg %p114
        %s232 = sand.u32 %s104, 1
        %s233 = scalar_lea.sflag [#allocation3], %s232
        %s234 = sand.u32 %s104, 1
        %s235 = smul.addr %s234, 12
        %s236 = scalar_lea.vmem [#allocation2], %s235
        %p237 = pneg %p143
        %p238 = pneg %p140
        %s239 = sand.u32 %s23, 1
        %s240 = scalar_lea.sflag [#allocation5], %s239
        %s241 = sand.u32 %s130, 1
        %s242 = smul.addr %s241, 2
        %s243 = scalar_lea.vmem [#allocation4], %s242
        %p244 = pneg %p169
        %p245 = pneg %p166
        %s246 = sand.u32 %s23, 1
        %s247 = scalar_lea.sflag [#allocation5], %s246
        %s248 = sand.u32 %s156, 1
        %s249 = smul.addr %s248, 2
        %s250 = scalar_lea.vmem [#allocation6], %s249
        %p251 = scmp.lt.s32.totalorder %s23, 1
        %s252 = scalar_select %p251, %s23, 1
        %s253 = smul.addr %s252, 6
        %s254 = smul.addr %s253, 2
        %s255 = scalar_lea.vmem %s1, %s254
        %p256 = scmp.lt.s32.totalorder %s23, 1
        %s257 = scalar_select %p256, %s23, 1
        %s258 = smul.addr %s257, 2
        %s259 = smul.addr %s258, 4
        %s260 = scalar_lea.vmem %s2, %s259
        %v262 = vld [vmem:[%s260] sm:$0xf]
        %v263 = vld [vmem:[%s260 + $0x4] sm:$0xf]
        %v264 = vld [vmem:[%s0] sm:$0x3]
        %265 = vset.pattern.permute.xlu0 0
        %266 = vperm.xlu0 %265, %v264
        %v267 = vpop.permute.xlu0 %266
        loop: start=0, step=1, limit=6
        $region33: #{distractor_encoder_forward.5} parent=31 // loop_pre_header
          _
        $region34: #{distractor_encoder_forward.5} parent=31 // loop_header
          %s269 = sphi 0, %s273
          %p270 = scmp.ge.s32.totalorder %s269, 6
          %v274 = vphi 0.0, %v375
          %v275 = vphi 0.0, %v378
        $region35: #{distractor_encoder_forward.5} parent=31 // loop_header_branch
          %272 = sbr.rel (%p270) target = $region39
        $region36: #{distractor_encoder_forward.5} parent=31 // loop_body
          %p276 = scmp.eq.s32.totalorder %s23, 0
          %s277 = ssub.s32 5, %s269
          %s278 = scalar_select %p276, %s269, %s277
          %s279 = smul.u32 %s278, 2
          %s280 = scalar_lea.vmem %s255, %s279
          %v281 = vld [vmem:[%s280] sm:$0x3]
          %v282 = vpack.c.bf16 %v274, %v274
          %284 = vrot.lane.b32.xlu0 %v282, 80
          %v285 = vpop.permute.xlu0 %284
          %v288 = vunpack.c.l.b16 %v262
          %v289 = vunpack.c.l.b16 %v263
          %v290 = vpack.c.b16 %v289, %v288
          %vm292 = vcmask 130048
          %v294 = vsel %vm292, %v285, 0
          %296 = vmatprep.subr.bf16.mxu0 0
          %297 = vmatpush1.bf16.msra.mxu0 0
          %298 = vmatprep.subr.bf16.mxu0 0
          %299 = vmatpush1.bf16.msra.mxu0 0
          %300 = vmatprep.subr.bf16.mxu0 0
          %301 = vmatpush1.bf16.msra.mxu0 0
          %302 = vmatprep.subr.bf16.mxu0 0
          %303 = vmatpush1.bf16.msra.mxu0 0
          %304 = vmatprep.subr.bf16.mxu0 0
          %305 = vmatpush1.bf16.msra.mxu0 0
          %306 = vmatprep.subr.bf16.mxu0 0
          %307 = vmatpush1.bf16.msra.mxu0 0
          %308 = vmatprep.subr.bf16.mxu0 0
          %309 = vmatpush1.bf16.msra.mxu0 0
          %310 = vmatprep.subr.bf16.mxu0 0
          %311 = vmatpush1.bf16.msra.mxu0 %v290
          %312 = vmatprep.subr.bf16.mxu0 0
          %313 = vmatpush2.bf16.msra.mxu0 0
          %314 = vmatprep.subr.bf16.mxu0 0
          %315 = vmatpush2.bf16.msra.mxu0 0
          %316 = vmatprep.subr.bf16.mxu0 0
          %317 = vmatpush2.bf16.msra.mxu0 0
          %318 = vmatprep.subr.bf16.mxu0 0
          %319 = vmatpush2.bf16.msra.mxu0 0
          %320 = vmatprep.subr.bf16.mxu0 0
          %321 = vmatpush2.bf16.msra.mxu0 0
          %322 = vmatprep.subr.bf16.mxu0 0
          %323 = vmatpush2.bf16.msra.mxu0 0
          %324 = vmatprep.subr.bf16.mxu0 0
          %325 = vmatpush2.bf16.msra.mxu0 0
          %326 = vmatprep.subr.bf16.mxu0 0
          %327 = vmatpush2.bf16.msra.mxu0 0
          %328 = vmatprep.mubr.bf16.mxu0 0
          %329 = vmatmul.mubr.bf16.gmra.mxu0 %v294
          %v330 = vpop.f32.mrf.mxu0
          %v331 = vadd.f32 0.0, %v330
          %v332 = vpop.f32.mrf.mxu0
          %v333 = vpop.f32.mrf.mxu0
          %v334 = vpop.f32.mrf.mxu0
          %335 = vdwg.mxu0
          %v336 = vadd.f32 %v281, %v331
          %v337 = vxor.u32 %v336, 2147483648
          %v338 = vmul.f32 %v337, 1.442695
          %v339 = vpow.pop %v338
          %v340 = vadd.f32 %v339, 1.0
          %v341 = vrcp.pop %v340
          %v342 = vmul.f32 1.0, %v341
          %v343 = vtanh.pop %v336
          %v344 = vmul.f32 %v342, %v275
          %346 = vrot.lane.b32.xlu0 %v343, 96
          %v347 = vpop.permute.xlu0 %346
          %v349 = vmul.f32 %v342, %v347
          %351 = vrot.lane.b32.xlu0 %v349, 16
          %v352 = vpop.permute.xlu0 %351
          %v354 = vadd.f32 %v344, %v352
          %v355 = vtanh.pop %v354
          %357 = vrot.lane.b32.xlu0 %v355, 32
          %v358 = vpop.permute.xlu0 %357
          %v360 = vmul.f32 %v342, %v358
          %v361 = vstv %s278
          %vm362 = vcmp.lt.s32.totalorder %v361, %v267
          %v363 = vsel %vm362, 1, 0
          %v364 = vcvt.s32.f32 %v363
          %v365 = vmul.f32 %v364, %v360
          %367 = vrot.lane.b32.xlu0 %v365, 80
          %v368 = vpop.permute.xlu0 %367
          %s370 = scalar_lea.vmem %s236, %s279 [#allocation2]
          %vm371 = vcmask 123904
          %372 = vst.msk [vmem:[%s370] sm:$0x3] %vm371, %v368
          %v373 = vsub.f32 1.0, %v364
          %v374 = vmul.f32 %v373, %v274
          %v375 = vadd.f32 %v365, %v374
          %v376 = vmul.f32 %v364, %v354
          %v377 = vmul.f32 %v373, %v275
          %v378 = vadd.f32 %v376, %v377
        $region37: #{distractor_encoder_forward.5} parent=31 // loop_footer
          %s273 = sadd.s32 1, %s269
        $region38: #{distractor_encoder_forward.5} parent=31 // loop_footer_branch
          %268 = sbr.rel target = $region34
        $region39: #{distractor_encoder_forward.5} parent=31 // loop_exit
          _
        %380 = vrot.lane.b32.xlu0 %v274, 80
        %v381 = vpop.permute.xlu0 %380
        %vm383 = vcmask 123904
        %384 = vst.msk [vmem:[%s243] sm:$0x3] %vm383, %v381
        %386 = vrot.lane.b32.xlu0 %v275, 112
        %v387 = vpop.permute.xlu0 %386
        %389 = vst.msk [vmem:[%s250] sm:$0x3] %vm383, %v387
        %s390 = sand.u32 %s104, 1
        %s391 = scalar_lea.sflag [#allocation3], %s390
        %s392 = sand.u32 %s104, 1
        %s393 = smul.addr %s392, 12
        %s394 = scalar_lea.vmem [#allocation2], %s393
        %s395 = sand.u32 %s23, 1
        %s396 = scalar_lea.sflag [#allocation5], %s395
        %s397 = sand.u32 %s130, 1
        %s398 = smul.addr %s397, 2
        %s399 = scalar_lea.vmem [#allocation4], %s398
        %s400 = sand.u32 %s23, 1
        %s401 = scalar_lea.sflag [#allocation5], %s400
        %s402 = sand.u32 %s156, 1
        %s403 = smul.addr %s402, 2
        %s404 = scalar_lea.vmem [#allocation6], %s403
        // Predicated region
        $region40: #{distractor_encoder_forward.5} parent=31 // pred_check
          %p405 = pneg %p114
        $region41: #{distractor_encoder_forward.5} parent=31 // pred_check_branch
          %407 = sbr.rel (%p405) target = $region43
        $region42: #{distractor_encoder_forward.5} parent=31 // pred_region
          %s409 = ssub.s32 192, 192
          %410 = vsyncadd %s391, %s409
          %s411 = smul.addr %s23, 6
          %s412 = smul.addr %s411, 32
          %s413 = scalar_lea.hbm %s3, %s412
          %s414 = sshll.u32 %s394, 4
          %s415 = int_to_ptr.vmem [resolvable:$true] %s414
          %420 = dma.vmem_to_hbm [thread:$0]  %s415, 192, %s413, %s391, 32, 32, 2
        $region43: #{distractor_encoder_forward.5} parent=31 // pred_fallthru
          _
        // Predicated region
        $region44: #{distractor_encoder_forward.5} parent=31 // pred_check
          %p421 = pneg %p140
        $region45: #{distractor_encoder_forward.5} parent=31 // pred_check_branch
          %423 = sbr.rel (%p421) target = $region47
        $region46: #{distractor_encoder_forward.5} parent=31 // pred_region
          %s425 = ssub.s32 32, 32
          %426 = vsyncadd %s396, %s425
          %s427 = smul.addr %s23, 32
          %s428 = scalar_lea.hbm %s4, %s427
          %s430 = sshll.u32 %s399, 4
          %s431 = int_to_ptr.vmem [resolvable:$true] %s430
          %433 = dma.vmem_to_hbm [thread:$0]  %s431, 32, %s428, %s396
        $region47: #{distractor_encoder_forward.5} parent=31 // pred_fallthru
          _
        // Predicated region
        $region48: #{distractor_encoder_forward.5} parent=31 // pred_check
          %p434 = pneg %p166
        $region49: #{distractor_encoder_forward.5} parent=31 // pred_check_branch
          %436 = sbr.rel (%p434) target = $region51
        $region50: #{distractor_encoder_forward.5} parent=31 // pred_region
          %s438 = ssub.s32 32, 32
          %439 = vsyncadd %s401, %s438
          %s440 = smul.addr %s23, 32
          %s441 = scalar_lea.hbm %s5, %s440
          %s443 = sshll.u32 %s404, 4
          %s444 = int_to_ptr.vmem [resolvable:$true] %s443
          %446 = dma.vmem_to_hbm [thread:$0]  %s444, 32, %s441, %s401
        $region51: #{distractor_encoder_forward.5} parent=31 // pred_fallthru
          _
      $region32: #{distractor_encoder_forward.5} parent=5 // pred_fallthru
        _
      %p447 = scmp.le.s32.totalorder 2, %s18
      // Predicated region
      $region52: #{distractor_encoder_forward.5} parent=5 // pred_check
        %p448 = pneg %p447
      $region53: #{distractor_encoder_forward.5} parent=5 // pred_check_branch
        %450 = sbr.rel (%p448) target = $region55
      $region54: #{distractor_encoder_forward.5} parent=5 // pred_region
        %s451 = ssub.s32 %s18, 2
        // Predicated region
        $region56: #{distractor_encoder_forward.5} parent=54 // pred_check
          %p452 = pneg %p120
        $region57: #{distractor_encoder_forward.5} parent=54 // pred_check_branch
          %454 = sbr.rel (%p452) target = $region59
        $region58: #{distractor_encoder_forward.5} parent=54 // pred_region
          %s455 = sand.u32 %s105, 1
          %s456 = scalar_lea.sflag [#allocation3], %s455
          %s457 = sand.u32 %s105, 1
          %s458 = smul.addr %s457, 12
          %s459 = scalar_lea.vmem [#allocation2], %s458
          %460 = dma.done %s456, 192
        $region59: #{distractor_encoder_forward.5} parent=54 // pred_fallthru
          _
        // Predicated region
        $region60: #{distractor_encoder_forward.5} parent=54 // pred_check
          %p461 = pneg %p146
        $region61: #{distractor_encoder_forward.5} parent=54 // pred_check_branch
          %463 = sbr.rel (%p461) target = $region63
        $region62: #{distractor_encoder_forward.5} parent=54 // pred_region
          %s464 = sand.u32 %s24, 1
          %s465 = scalar_lea.sflag [#allocation5], %s464
          %s466 = sand.u32 %s131, 1
          %s467 = smul.addr %s466, 2
          %s468 = scalar_lea.vmem [#allocation4], %s467
          %469 = dma.done %s465, 32
        $region63: #{distractor_encoder_forward.5} parent=54 // pred_fallthru
          _
        // Predicated region
        $region64: #{distractor_encoder_forward.5} parent=54 // pred_check
          %p470 = pneg %p172
        $region65: #{distractor_encoder_forward.5} parent=54 // pred_check_branch
          %472 = sbr.rel (%p470) target = $region67
        $region66: #{distractor_encoder_forward.5} parent=54 // pred_region
          %s473 = sand.u32 %s24, 1
          %s474 = scalar_lea.sflag [#allocation5], %s473
          %s475 = sand.u32 %s157, 1
          %s476 = smul.addr %s475, 2
          %s477 = scalar_lea.vmem [#allocation6], %s476
          %478 = dma.done %s474, 32
        $region67: #{distractor_encoder_forward.5} parent=54 // pred_fallthru
          _
      $region55: #{distractor_encoder_forward.5} parent=5 // pred_fallthru
        _
    $region6: #{distractor_encoder_forward.5} parent=1 // loop_footer
      %s22 = sadd.s32 1, %s18
    $region7: #{distractor_encoder_forward.5} parent=1 // loop_footer_branch
      %17 = sbr.rel target = $region3
    $region8: #{distractor_encoder_forward.5} parent=1 // loop_exit
      _
    %479 = vsyncpa [#allocation3], 1
    %s480 = scalar_lea.sflag [#allocation3], 1
    %481 = vsyncpa %s480, 1
    %482 = vsyncpa [#allocation5], 1
    %s483 = scalar_lea.sflag [#allocation5], 1
    %484 = vsyncpa %s483, 1

// kernel: distractor_encoder_forward.4
$region0: #{distractor_encoder_forward.4}
  #allocation0 [shape = 'u32[]', space=smem, size = 0x4, offset = 0x4, fixed_abs, tag = 'smem constant byte address 0x4 - core index']
  #allocation1 [shape = 'u32[144,128]{1,0:T(1,128)}', space=vmem, size = 0x12000, scoped, tag = 'internal scratch']
  %s0 = inlined_call_operand.vmem [shape: s32[2,1], index: 0, kind: input, shape index: {}]
  %s1 = inlined_call_operand.vmem [shape: f32[2,3,2,64], index: 1, kind: input, shape index: {}]
  %s2 = inlined_call_operand.vmem [shape: bf16[2,16,64], index: 2, kind: input, shape index: {}]
  %s3 = inlined_call_operand.vmem [shape: f32[2,3,2,16], index: 3, kind: output, shape index: {0}]
  %s4 = inlined_call_operand.hbm [shape: f32[2,2,16], index: 4, kind: output, shape index: {1}]
  %s5 = inlined_call_operand.hbm [shape: f32[2,2,16], index: 5, kind: output, shape index: {2}]
  %6 = xla_tuple %s3, %s4, %s5
  %s7 = sld [smem:[#allocation0]]
  $region68: #{distractor_encoder_forward.4} parent=0
    _
  %s9 = ssub.s32 1, %s7
  %s10 = scalar_select 0, %s9, %s7
  $region1: #{distractor_encoder_forward.4} parent=0
    #allocation2 [shape = 'u8[2048]{0}', space=vmem, size = 0x800, scoped, tag = 'output window, operand 1']
    #allocation3 [shape = 's32[2]{0}', space=sflag, size = 0x8, scoped, tag = 'scoped memory for distractor_encoder_forward.4']
    #allocation4 [shape = 'u8[2048]{0}', space=vmem, size = 0x800, scoped, tag = 'output window, operand 2']
    #allocation5 [shape = 's32[2]{0}', space=sflag, size = 0x8, scoped, tag = 'scoped memory for distractor_encoder_forward.4']
    %11 = vsyncpa [#allocation3], 0
    %s12 = scalar_lea.sflag [#allocation3], 1
    %13 = vsyncpa %s12, 0
    %14 = vsyncpa [#allocation5], 0
    %s15 = scalar_lea.sflag [#allocation5], 1
    %16 = vsyncpa %s15, 0
    loop: start=0, step=1, limit=4
    $region2: #{distractor_encoder_forward.4} parent=1 // loop_pre_header
      _
    $region3: #{distractor_encoder_forward.4} parent=1 // loop_header
      %s18 = sphi 0, %s22
      %p19 = scmp.ge.s32.totalorder %s18, 4
      %s26 = sphi 0, %s26
      %s28 = sphi 0, %s26
      %s29 = sphi 0, %s28
      %s43 = sphi 0, %s29
      %s49 = sphi 0, %s51
      %s52 = sphi 0, %s49
      %s53 = sphi 0, %s52
      %s69 = sphi 0, %s53
      %s75 = sphi 0, %s77
      %s78 = sphi 0, %s75
      %s79 = sphi 0, %s78
      %s95 = sphi 0, %s79
      %s101 = sphi 0, %s103
      %s104 = sphi 0, %s101
      %s105 = sphi 0, %s104
      %s121 = sphi 0, %s105
      %s127 = sphi 0, %s129
      %s130 = sphi 0, %s127
      %s131 = sphi 0, %s130
      %s147 = sphi 0, %s131
      %s153 = sphi 0, %s155
      %s156 = sphi 0, %s153
      %s157 = sphi 0, %s156
      %s173 = sphi 0, %s157
    $region4: #{distractor_encoder_forward.4} parent=1 // loop_header_branch
      %21 = sbr.rel (%p19) target = $region8
    $region5: #{distractor_encoder_forward.4} parent=1 // loop_body
      %s23 = ssub.s32 %s18, 1
      %s24 = ssub.s32 %s18, 2
      %s25 = sadd.s32 %s18, 1
      %s27 = sadd.s32 %s26, 1
      %p30 = scmp.eq.s32.totalorder %s18, 1
      %p31 = scmp.ne.s32.totalorder %s26, %s28
      %p32 = scmp.eq.s32.totalorder %s18, 0
      %p33 = por %p31, %p32
      %p34 = scmp.ne.s32.totalorder %s26, %s28
      %p35 = scmp.eq.s32.totalorder %s23, 1
      %p36 = por %p34, %p35
      %p37 = scmp.ne.s32.totalorder %s28, %s29
      %p38 = scmp.eq.s32.totalorder %s23, 0
      %p39 = por %p37, %p38
      %p40 = scmp.ne.s32.totalorder %s28, %s29
      %p41 = scmp.eq.s32.totalorder %s24, 1
      %p42 = por %p40, %p41
      %p44 = scmp.ne.s32.totalorder %s29, %s43
      %p45 = scmp.eq.s32.totalorder %s24, 0
      %p46 = por %p44, %p45
      %s47 = ssub.s32 %s18, %s25
      %p48 = scmp.eq.s32.totalorder %s47, 0
      %s50 = sadd.s32 %s49, 1
      %s51 = scalar_select %p48, %s49, %s50
      %p54 = pneg %p48
      %p55 = scmp.eq.s32.totalorder %s18, 1
      %p56 = por %p54, %p55
      %p57 = scmp.ne.s32.totalorder %s49, %s52
      %p58 = scmp.eq.s32.totalorder %s18, 0
      %p59 = por %p57, %p58
      %p60 = scmp.ne.s32.totalorder %s49, %s52
      %p61 = scmp.eq.s32.totalorder %s23, 1
      %p62 = por %p60, %p61
      %p63 = scmp.ne.s32.totalorder %s52, %s53
      %p64 = scmp.eq.s32.totalorder %s23, 0
      %p65 = por %p63, %p64
      %p66 = scmp.ne.s32.totalorder %s52, %s53
      %p67 = scmp.eq.s32.totalorder %s24, 1
      %p68 = por %p66, %p67
      %p70 = scmp.ne.s32.totalorder %s53, %s69
      %p71 = scmp.eq.s32.totalorder %s24, 0
      %p72 = por %p70, %p71
      %s73 = ssub.s32 %s18, %s25
      %p74 = scmp.eq.s32.totalorder %s73, 0
      %s76 = sadd.s32 %s75, 1
      %s77 = scalar_select %p74, %s75, %s76
      %p80 = pneg %p74
      %p81 = scmp.eq.s32.totalorder %s18, 1
      %p82 = por %p80, %p81
      %p83 = scmp.ne.s32.totalorder %s75, %s78
      %p84 = scmp.eq.s32.totalorder %s18, 0
      %p85 = por %p83, %p84
      %p86 = scmp.ne.s32.totalorder %s75, %s78
      %p87 = scmp.eq.s32.totalorder %s23, 1
      %p88 = por %p86, %p87
      %p89 = scmp.ne.s32.totalorder %s78, %s79
      %p90 = scmp.eq.s32.totalorder %s23, 0
      %p91 = por %p89, %p90
      %p92 = scmp.ne.s32.totalorder %s78, %s79
      %p93 = scmp.eq.s32.totalorder %s24, 1
      %p94 = por %p92, %p93
      %p96 = scmp.ne.s32.totalorder %s79, %s95
      %p97 = scmp.eq.s32.totalorder %s24, 0
      %p98 = por %p96, %p97
      %s99 = ssub.s32 %s18, %s25
      %p100 = scmp.eq.s32.totalorder %s99, 0
      %s102 = sadd.s32 %s101, 1
      %s103 = scalar_select %p100, %s101, %s102
      %p106 = pneg %p100
      %p107 = scmp.eq.s32.totalorder %s18, 1
      %p108 = por %p106, %p107
      %p109 = scmp.ne.s32.totalorder %s101, %s104
      %p110 = scmp.eq.s32.totalorder %s18, 0
      %p111 = por %p109, %p110
      %p112 = scmp.ne.s32.totalorder %s101, %s104
      %p113 = scmp.eq.s32.totalorder %s23, 1
      %p114 = por %p112, %p113
      %p115 = scmp.ne.s32.totalorder %s104, %s105
      %p116 = scmp.eq.s32.totalorder %s23, 0
      %p117 = por %p115, %p116
      %p118 = scmp.ne.s32.totalorder %s104, %s105
      %p119 = scmp.eq.s32.totalorder %s24, 1
      %p120 = por %p118, %p119
      %p122 = scmp.ne.s32.totalorder %s105, %s121
      %p123 = scmp.eq.s32.totalorder %s24, 0
      %p124 = por %p122, %p123
      %s125 = ssub.s32 %s18, %s25
      %p126 = scmp.eq.s32.totalorder %s125, 0
      %s128 = sadd.s32 %s127, 1
      %s129 = scalar_select %p126, %s127, %s128
      %p132 = pneg %p126
      %p133 = scmp.eq.s32.totalorder %s18, 1
      %p134 = por %p132, %p133
      %p135 = scmp.ne.s32.totalorder %s127, %s130
      %p136 = scmp.eq.s32.totalorder %s18, 0
      %p137 = por %p135, %p136
      %p138 = scmp.ne.s32.totalorder %s127, %s130
      %p139 = scmp.eq.s32.totalorder %s23, 1
      %p140 = por %p138, %p139
      %p141 = scmp.ne.s32.totalorder %s130, %s131
      %p142 = scmp.eq.s32.totalorder %s23, 0
      %p143 = por %p141, %p142
      %p144 = scmp.ne.s32.totalorder %s130, %s131
      %p145 = scmp.eq.s32.totalorder %s24, 1
      %p146 = por %p144, %p145
      %p148 = scmp.ne.s32.totalorder %s131, %s147
      %p149 = scmp.eq.s32.totalorder %s24, 0
      %p150 = por %p148, %p149
      %s151 = ssub.s32 %s18, %s25
      %p152 = scmp.eq.s32.totalorder %s151, 0
      %s154 = sadd.s32 %s153, 1
      %s155 = scalar_select %p152, %s153, %s154
      %p158 = pneg %p152
      %p159 = scmp.eq.s32.totalorder %s18, 1
      %p160 = por %p158, %p159
      %p161 = scmp.ne.s32.totalorder %s153, %s156
      %p162 = scmp.eq.s32.totalorder %s18, 0
      %p163 = por %p161, %p162
      %p164 = scmp.ne.s32.totalorder %s153, %s156
      %p165 = scmp.eq.s32.totalorder %s23, 1
      %p166 = por %p164, %p165
      %p167 = scmp.ne.s32.totalorder %s156, %s157
      %p168 = scmp.eq.s32.totalorder %s23, 0
      %p169 = por %p167, %p168
      %p170 = scmp.ne.s32.totalorder %s156, %s157
      %p171 = scmp.eq.s32.totalorder %s24, 1
      %p172 = por %p170, %p171
      %p174 = scmp.ne.s32.totalorder %s157, %s173
      %p175 = scmp.eq.s32.totalorder %s24, 0
      %p176 = por %p174, %p175
      %p177 = scmp.le.s32.totalorder 1, %s18
      %p178 = scmp.lt.s32.totalorder %s18, 3
      %p179 = pnand %p177, %p178
      %p180 = pneg %p179
      // Predicated region
      $region9: #{distractor_encoder_forward.4} parent=5 // pred_check
        _
      $region10: #{distractor_encoder_forward.4} parent=5 // pred_check_branch
        %182 = sbr.rel (%p179) target = $region12
      $region11: #{distractor_encoder_forward.4} parent=5 // pred_region
        %s183 = ssub.s32 %s18, 1
        // Predicated region
        $region13: #{distractor_encoder_forward.4} parent=11 // pred_check
          %p184 = pneg %p39
        $region14: #{distractor_encoder_forward.4} parent=11 // pred_check_branch
          %186 = sbr.rel (%p184) target = $region16
        $region15: #{distractor_encoder_forward.4} parent=11 // pred_region
          _
        $region16: #{distractor_encoder_forward.4} parent=11 // pred_fallthru
          _
      $region12: #{distractor_encoder_forward.4} parent=5 // pred_fallthru
        _
      %p187 = scmp.lt.s32.totalorder %s18, 2
      // Predicated region
      $region17: #{distractor_encoder_forward.4} parent=5 // pred_check
        %p188 = pneg %p187
      $region18: #{distractor_encoder_forward.4} parent=5 // pred_check_branch
        %190 = sbr.rel (%p188) target = $region20
      $region19: #{distractor_encoder_forward.4} parent=5 // pred_region
        // Predicated region
        $region21: #{distractor_encoder_forward.4} parent=19 // pred_check
          %p191 = pneg %p59
        $region22: #{distractor_encoder_forward.4} parent=19 // pred_check_branch
          %193 = sbr.rel (%p191) target = $region24
        $region23: #{distractor_encoder_forward.4} parent=19 // pred_region
          %p194 = scmp.lt.s32.totalorder %s18, 1
          %s195 = scalar_select %p194, %s18, 1
          %s196 = smul.addr %s195, 3
          %s197 = smul.addr %s196, 2
          %s198 = scalar_lea.vmem %s1, %s197
        $region24: #{distractor_encoder_forward.4} parent=19 // pred_fallthru
          _
        // Predicated region
        $region25: #{distractor_encoder_forward.4} parent=19 // pred_check
          %p199 = pneg %p85
        $region26: #{distractor_encoder_forward.4} parent=19 // pred_check_branch
          %201 = sbr.rel (%p199) target = $region28
        $region27: #{distractor_encoder_forward.4} parent=19 // pred_region
          %p202 = scmp.lt.s32.totalorder %s18, 1
          %s203 = scalar_select %p202, %s18, 1
          %s204 = smul.addr %s203, 2
          %s205 = smul.addr %s204, 4
          %s206 = scalar_lea.vmem %s2, %s205
        $region28: #{distractor_encoder_forward.4} parent=19 // pred_fallthru
          _
      $region20: #{distractor_encoder_forward.4} parent=5 // pred_fallthru
        _
      %p207 = scmp.le.s32.totalorder 1, %s18
      %p208 = scmp.lt.s32.totalorder %s18, 3
      %p209 = pnand %p207, %p208
      %p210 = pneg %p209
      // Predicated region
      $region29: #{distractor_encoder_forward.4} parent=5 // pred_check
        _
      $region30: #{distractor_encoder_forward.4} parent=5 // pred_check_branch
        %212 = sbr.rel (%p209) target = $region32
      $region31: #{distractor_encoder_forward.4} parent=5 // pred_region
        %s213 = ssub.s32 %s18, 1
        %p214 = pneg %p39
        %p215 = pneg %p36
        %p216 = scmp.lt.s32.totalorder %s23, 1
        %s217 = scalar_select %p216, %s23, 1
        %s218 = smul.addr %s217, 3
        %s219 = smul.addr %s218, 2
        %s220 = scalar_lea.vmem %s1, %s219
        %p221 = pneg %p65
        %p222 = pneg %p62
        %p223 = scmp.lt.s32.totalorder %s23, 1
        %s224 = scalar_select %p223, %s23, 1
        %s225 = smul.addr %s224, 2
        %s226 = smul.addr %s225, 4
        %s227 = scalar_lea.vmem %s2, %s226
        %p228 = pneg %p91
        %p229 = pneg %p88
        %p230 = pneg %p117
        %p231 = pneg %p114
        %p232 = scmp.lt.s32.totalorder %s23, 1
        %s233 = scalar_select %p232, %s23, 1
        %s234 = smul.addr %s233, 3
        %s235 = smul.addr %s234, 2
        %s236 = scalar_lea.vmem %s3, %s235
        %p237 = pneg %p143
        %p238 = pneg %p140
        %s239 = sand.u32 %s130, 1
        %s240 = scalar_lea.sflag [#allocation3], %s239
        %s241 = sand.u32 %s130, 1
        %s242 = smul.addr %s241, 2
        %s243 = scalar_lea.vmem [#allocation2], %s242
        %p244 = pneg %p169
        %p245 = pneg %p166
        %s246 = sand.u32 %s156, 1
        %s247 = scalar_lea.sflag [#allocation5], %s246
        %s248 = sand.u32 %s156, 1
        %s249 = smul.addr %s248, 2
        %s250 = scalar_lea.vmem [#allocation4], %s249
        %p251 = scmp.lt.s32.totalorder %s23, 1
        %s252 = scalar_select %p251, %s23, 1
        %s253 = smul.addr %s252, 3
        %s254 = smul.addr %s253, 2
        %s255 = scalar_lea.vmem %s1, %s254
        %p256 = scmp.lt.s32.totalorder %s23, 1
        %s257 = scalar_select %p256, %s23, 1
        %s258 = smul.addr %s257, 2
        %s259 = smul.addr %s258, 4
        %s260 = scalar_lea.vmem %s2, %s259
        %p261 = scmp.lt.s32.totalorder %s23, 1
        %s262 = scalar_select %p261, %s23, 1
        %s263 = smul.addr %s262, 3
        %s264 = smul.addr %s263, 2
        %s265 = scalar_lea.vmem %s3, %s264
        %v267 = vld [vmem:[%s260] sm:$0xf]
        %v268 = vld [vmem:[%s260 + $0x4] sm:$0xf]
        %v269 = vld [vmem:[%s0] sm:$0x3]
        %270 = vset.pattern.permute.xlu0 0
        %271 = vperm.xlu0 %270, %v269
        %v272 = vpop.permute.xlu0 %271
        loop: start=0, step=1, limit=3
        $region33: #{distractor_encoder_forward.4} parent=31 // loop_pre_header
          _
        $region34: #{distractor_encoder_forward.4} parent=31 // loop_header
          %s274 = sphi 0, %s278
          %p275 = scmp.ge.s32.totalorder %s274, 3
          %v279 = vphi 0.0, %v380
          %v280 = vphi 0.0, %v383
        $region35: #{distractor_encoder_forward.4} parent=31 // loop_header_branch
          %277 = sbr.rel (%p275) target = $region39
        $region36: #{distractor_encoder_forward.4} parent=31 // loop_body
          %p281 = scmp.eq.s32.totalorder %s23, 0
          %s282 = ssub.s32 2, %s274
          %s283 = scalar_select %p281, %s274, %s282
          %s284 = smul.u32 %s283, 2
          %s285 = scalar_lea.vmem %s255, %s284
          %v286 = vld [vmem:[%s285] sm:$0x3]
          %v287 = vpack.c.bf16 %v279, %v279
          %289 = vrot.lane.b32.xlu0 %v287, 80
          %v290 = vpop.permute.xlu0 %289
          %v293 = vunpack.c.l.b16 %v267
          %v294 = vunpack.c.l.b16 %v268
          %v295 = vpack.c.b16 %v294, %v293
          %vm297 = vcmask 130048
          %v299 = vsel %vm297, %v290, 0
          %301 = vmatprep.subr.bf16.mxu0 0
          %302 = vmatpush1.bf16.msra.mxu0 0
          %303 = vmatprep.subr.bf16.mxu0 0
          %304 = vmatpush1.bf16.msra.mxu0 0
          %305 = vmatprep.subr.bf16.mxu0 0
          %306 = vmatpush1.bf16.msra.mxu0 0
          %307 = vmatprep.subr.bf16.mxu0 0
          %308 = vmatpush1.bf16.msra.mxu0 0
          %309 = vmatprep.subr.bf16.mxu0 0
          %310 = vmatpush1.bf16.msra.mxu0 0
          %311 = vmatprep.subr.bf16.mxu0 0
          %312 = vmatpush1.bf16.msra.mxu0 0
          %313 = vmatprep.subr.bf16.mxu0 0
          %314 = vmatpush1.bf16.msra.mxu0 0
          %315 = vmatprep.subr.bf16.mxu0 0
          %316 = vmatpush1.bf16.msra.mxu0 %v295
          %317 = vmatprep.subr.bf16.mxu0 0
          %318 = vmatpush2.bf16.msra.mxu0 0
          %319 = vmatprep.subr.bf16.mxu0 0
          %320 = vmatpush2.bf16.msra.mxu0 0
          %321 = vmatprep.subr.bf16.mxu0 0
          %322 = vmatpush2.bf16.msra.mxu0 0
          %323 = vmatprep.subr.bf16.mxu0 0
          %324 = vmatpush2.bf16.msra.mxu0 0
          %325 = vmatprep.subr.bf16.mxu0 0
          %326 = vmatpush2.bf16.msra.mxu0 0
          %327 = vmatprep.subr.bf16.mxu0 0
          %328 = vmatpush2.bf16.msra.mxu0 0
          %329 = vmatprep.subr.bf16.mxu0 0
          %330 = vmatpush2.bf16.msra.mxu0 0
          %331 = vmatprep.subr.bf16.mxu0 0
          %332 = vmatpush2.bf16.msra.mxu0 0
          %333 = vmatprep.mubr.bf16.mxu0 0
          %334 = vmatmul.mubr.bf16.gmra.mxu0 %v299
          %v335 = vpop.f32.mrf.mxu0
          %v336 = vadd.f32 0.0, %v335
          %v337 = vpop.f32.mrf.mxu0
          %v338 = vpop.f32.mrf.mxu0
          %v339 = vpop.f32.mrf.mxu0
          %340 = vdwg.mxu0
          %v341 = vadd.f32 %v286, %v336
          %v342 = vxor.u32 %v341, 2147483648
          %v343 = vmul.f32 %v342, 1.442695
          %v344 = vpow.pop %v343
          %v345 = vadd.f32 %v344, 1.0
          %v346 = vrcp.pop %v345
          %v347 = vmul.f32 1.0, %v346
          %v348 = vtanh.pop %v341
          %v349 = vmul.f32 %v347, %v280
          %351 = vrot.lane.b32.xlu0 %v348, 96
          %v352 = vpop.permute.xlu0 %351
          %v354 = vmul.f32 %v347, %v352
          %356 = vrot.lane.b32.xlu0 %v354, 16
          %v357 = vpop.permute.xlu0 %356
          %v359 = vadd.f32 %v349, %v357
          %v360 = vtanh.pop %v359
          %362 = vrot.lane.b32.xlu0 %v360, 32
          %v363 = vpop.permute.xlu0 %362
          %v365 = vmul.f32 %v347, %v363
          %v366 = vstv %s283
          %vm367 = vcmp.lt.s32.totalorder %v366, %v272
          %v368 = vsel %vm367, 1, 0
          %v369 = vcvt.s32.f32 %v368
          %v370 = vmul.f32 %v369, %v365
          %372 = vrot.lane.b32.xlu0 %v370, 80
          %v373 = vpop.permute.xlu0 %372
          %s375 = scalar_lea.vmem %s265, %s284
          %vm376 = vcmask 123904
          %377 = vst.msk [vmem:[%s375] sm:$0x3] %vm376, %v373
          %v378 = vsub.f32 1.0, %v369
          %v379 = vmul.f32 %v378, %v279
          %v380 = vadd.f32 %v370, %v379
          %v381 = vmul.f32 %v369, %v359
          %v382 = vmul.f32 %v378, %v280
          %v383 = vadd.f32 %v381, %v382
        $region37: #{distractor_encoder_forward.4} parent=31 // loop_footer
          %s278 = sadd.s32 1, %s274
        $region38: #{distractor_encoder_forward.4} parent=31 // loop_footer_branch
          %273 = sbr.rel target = $region34
        $region39: #{distractor_encoder_forward.4} parent=31 // loop_exit
          _
        %385 = vrot.lane.b32.xlu0 %v279, 80
        %v386 = vpop.permute.xlu0 %385
        %vm388 = vcmask 123904
        %389 = vst.msk [vmem:[%s243] sm:$0x3] %vm388, %v386
        %391 = vrot.lane.b32.xlu0 %v280, 112
        %v392 = vpop.permute.xlu0 %391
        %394 = vst.msk [vmem:[%s250] sm:$0x3] %vm388, %v392
        %p395 = scmp.lt.s32.totalorder %s23, 1
        %s396 = scalar_select %p395, %s23, 1
        %s397 = smul.addr %s396, 3
        %s398 = smul.addr %s397, 2
        %s399 = scalar_lea.vmem %s3, %s398
        %s400 = sand.u32 %s130, 1
        %s401 = scalar_lea.sflag [#allocation3], %s400
        %s402 = sand.u32 %s130, 1
        %s403 = smul.addr %s402, 2
        %s404 = scalar_lea.vmem [#allocation2], %s403
        %s405 = sand.u32 %s156, 1
        %s406 = scalar_lea.sflag [#allocation5], %s405
        %s407 = sand.u32 %s156, 1
        %s408 = smul.addr %s407, 2
        %s409 = scalar_lea.vmem [#allocation4], %s408
        // Predicated region
        $region40: #{distractor_encoder_forward.4} parent=31 // pred_check
          %p410 = pneg %p114
        $region41: #{distractor_encoder_forward.4} parent=31 // pred_check_branch
          %412 = sbr.rel (%p410) target = $region43
        $region42: #{distractor_encoder_forward.4} parent=31 // pred_region
          _
        $region43: #{distractor_encoder_forward.4} parent=31 // pred_fallthru
          _
        // Predicated region
        $region44: #{distractor_encoder_forward.4} parent=31 // pred_check
          %p413 = pneg %p140
        $region45: #{distractor_encoder_forward.4} parent=31 // pred_check_branch
          %415 = sbr.rel (%p413) target = $region47
        $region46: #{distractor_encoder_forward.4} parent=31 // pred_region
          %s417 = ssub.s32 32, 32
          %418 = vsyncadd %s401, %s417
          %s419 = smul.addr %s23, 32
          %s420 = scalar_lea.hbm %s4, %s419
          %s422 = sshll.u32 %s404, 4
          %s423 = int_to_ptr.vmem [resolvable:$true] %s422
          %425 = dma.vmem_to_hbm [thread:$0]  %s423, 32, %s420, %s401
        $region47: #{distractor_encoder_forward.4} parent=31 // pred_fallthru
          _
        // Predicated region
        $region48: #{distractor_encoder_forward.4} parent=31 // pred_check
          %p426 = pneg %p166
        $region49: #{distractor_encoder_forward.4} parent=31 // pred_check_branch
          %428 = sbr.rel (%p426) target = $region51
        $region50: #{distractor_encoder_forward.4} parent=31 // pred_region
          %s430 = ssub.s32 32, 32
          %431 = vsyncadd %s406, %s430
          %s432 = smul.addr %s23, 32
          %s433 = scalar_lea.hbm %s5, %s432
          %s435 = sshll.u32 %s409, 4
          %s436 = int_to_ptr.vmem [resolvable:$true] %s435
          %438 = dma.vmem_to_hbm [thread:$0]  %s436, 32, %s433, %s406
        $region51: #{distractor_encoder_forward.4} parent=31 // pred_fallthru
          _
      $region32: #{distractor_encoder_forward.4} parent=5 // pred_fallthru
        _
      %p439 = scmp.le.s32.totalorder 2, %s18
      // Predicated region
      $region52: #{distractor_encoder_forward.4} parent=5 // pred_check
        %p440 = pneg %p439
      $region53: #{distractor_encoder_forward.4} parent=5 // pred_check_branch
        %442 = sbr.rel (%p440) target = $region55
      $region54: #{distractor_encoder_forward.4} parent=5 // pred_region
        %s443 = ssub.s32 %s18, 2
        // Predicated region
        $region56: #{distractor_encoder_forward.4} parent=54 // pred_check
          %p444 = pneg %p120
        $region57: #{distractor_encoder_forward.4} parent=54 // pred_check_branch
          %446 = sbr.rel (%p444) target = $region59
        $region58: #{distractor_encoder_forward.4} parent=54 // pred_region
          %p447 = scmp.lt.s32.totalorder %s24, 1
          %s448 = scalar_select %p447, %s24, 1
          %s449 = smul.addr %s448, 3
          %s450 = smul.addr %s449, 2
          %s451 = scalar_lea.vmem %s3, %s450
        $region59: #{distractor_encoder_forward.4} parent=54 // pred_fallthru
          _
        // Predicated region
        $region60: #{distractor_encoder_forward.4} parent=54 // pred_check
          %p452 = pneg %p146
        $region61: #{distractor_encoder_forward.4} parent=54 // pred_check_branch
          %454 = sbr.rel (%p452) target = $region63
        $region62: #{distractor_encoder_forward.4} parent=54 // pred_region
          %s455 = sand.u32 %s131, 1
          %s456 = scalar_lea.sflag [#allocation3], %s455
          %s457 = sand.u32 %s131, 1
          %s458 = smul.addr %s457, 2
          %s459 = scalar_lea.vmem [#allocation2], %s458
          %460 = dma.done %s456, 32
        $region63: #{distractor_encoder_forward.4} parent=54 // pred_fallthru
          _
        // Predicated region
        $region64: #{distractor_encoder_forward.4} parent=54 // pred_check
          %p461 = pneg %p172
        $region65: #{distractor_encoder_forward.4} parent=54 // pred_check_branch
          %463 = sbr.rel (%p461) target = $region67
        $region66: #{distractor_encoder_forward.4} parent=54 // pred_region
          %s464 = sand.u32 %s157, 1
          %s465 = scalar_lea.sflag [#allocation5], %s464
          %s466 = sand.u32 %s157, 1
          %s467 = smul.addr %s466, 2
          %s468 = scalar_lea.vmem [#allocation4], %s467
          %469 = dma.done %s465, 32
        $region67: #{distractor_encoder_forward.4} parent=54 // pred_fallthru
          _
      $region55: #{distractor_encoder_forward.4} parent=5 // pred_fallthru
        _
    $region6: #{distractor_encoder_forward.4} parent=1 // loop_footer
      %s22 = sadd.s32 1, %s18
    $region7: #{distractor_encoder_forward.4} parent=1 // loop_footer_branch
      %17 = sbr.rel target = $region3
    $region8: #{distractor_encoder_forward.4} parent=1 // loop_exit
      _
    %470 = vsyncpa [#allocation3], 1
    %s471 = scalar_lea.sflag [#allocation3], 1
    %472 = vsyncpa %s471, 1
    %473 = vsyncpa [#allocation5], 1
    %s474 = scalar_lea.sflag [#allocation5], 1
    %475 = vsyncpa %s474, 1

</llo_original>
